<compile_context>
chip_gen: v7x
topology: tpu7x:2x2x1
jax: 0.10.0
libtpu: 0.0.40
codegen_flags: <defaults>
</compile_context>

<pallas_src>
import math
import functools

import jax
import jax.numpy as jnp
from jax.experimental import pallas as pl
from jax.experimental.pallas import tpu as pltpu


def _layernorm(x, gamma, beta, eps=1e-5):
    mu = jnp.mean(x, axis=-1, keepdims=True)
    var = jnp.mean((x - mu) ** 2, axis=-1, keepdims=True)
    return (x - mu) * jax.lax.rsqrt(var + eps) * gamma + beta


def _gelu_exact(x):
    # PyTorch F.gelu default (erf-based, exact)
    return 0.5 * x * (1.0 + jax.lax.erf(x * (1.0 / math.sqrt(2.0))))


def transformer_block_kernel(
    # inputs
    x_ref,                       # (S, H)  f32   (batch dim squeezed)
    wqkv_ref, bqkv_ref,          # (H,3H) bf16, (1,3H) f32  (Q slice pre-scaled)
    wo_ref, bo_ref,              # (H,H)  bf16, (1,H)  f32
    ln1g_ref, ln1b_ref,          # (1,H) f32
    w1_ref, b1_ref,              # (H,I) bf16, (1,I) f32
    w2_ref, b2_ref,              # (I,H) bf16, (1,H) f32
    ln2g_ref, ln2b_ref,          # (1,H) f32
    # output
    o_ref,                       # (TS, H)
    # scratch (persists across the query-tile grid axis)
    q_sc, k_sc, v_sc,            # (S, H) bf16 each
    *, num_heads, ts,
):
    qi = pl.program_id(1)
    S, H = x_ref.shape
    hd = H // num_heads

    # ---- once per batch element: fused QKV projection for the whole sequence ----
    @pl.when(qi == 0)
    def _():
        x_full = x_ref[...].astype(jnp.bfloat16)                      # (S, H)
        qkv = jnp.dot(x_full, wqkv_ref[...],
                      preferred_element_type=jnp.float32) + bqkv_ref[...]
        qkv = qkv.astype(jnp.bfloat16)                                # (S, 3H)
        q_sc[...] = qkv[:, 0 * H:1 * H]   # already scaled by 1/sqrt(hd) (folded into Wq)
        k_sc[...] = qkv[:, 1 * H:2 * H]
        v_sc[...] = qkv[:, 2 * H:3 * H]

    # ---- per query tile ----
    row0 = pl.multiple_of(qi * ts, ts)
    q_tile = q_sc[pl.ds(row0, ts), :]                                 # (ts, H) bf16
    wo = wo_ref[...]                                                  # (H, H) bf16

    acc = jnp.zeros((ts, H), dtype=jnp.float32)
    for h in range(num_heads):
        sl = slice(h * hd, (h + 1) * hd)
        qh = q_tile[:, sl]                                            # (ts, hd) bf16
        kh = k_sc[:, sl]                                              # (S,  hd) bf16
        vh = v_sc[:, sl]                                              # (S,  hd) bf16
        # scores = q_h @ k_h^T  (contract last dims; no explicit transpose)
        s = jax.lax.dot_general(qh, kh, (((1,), (1,)), ((), ())),
                                preferred_element_type=jnp.float32)   # (ts, S) f32
        m = jnp.max(s, axis=-1, keepdims=True)
        e = jnp.exp(s - m)
        p = e * pl.reciprocal(jnp.sum(e, axis=-1, keepdims=True), approx=True)
        ch = jnp.dot(p.astype(jnp.bfloat16), vh,
                     preferred_element_type=jnp.float32)              # (ts, hd)
        # output projection folded per head: context @ Wo == sum_h c_h @ Wo[h]
        acc = acc + jnp.dot(ch.astype(jnp.bfloat16), wo[sl, :],
                            preferred_element_type=jnp.float32)       # (ts, H)
    attn_out = acc + bo_ref[...]

    # residual + LayerNorm 1 (f32)
    x_tile = x_ref[pl.ds(row0, ts), :]                                # (ts, H) f32
    x1 = _layernorm(x_tile + attn_out, ln1g_ref[...], ln1b_ref[...])

    # ---- feed-forward (linear -> GELU -> linear), dropout = identity ----
    h1 = jnp.dot(x1.astype(jnp.bfloat16), w1_ref[...],
                 preferred_element_type=jnp.float32) + b1_ref[...]
    h1 = _gelu_exact(h1)
    ff = jnp.dot(h1.astype(jnp.bfloat16), w2_ref[...],
                 preferred_element_type=jnp.float32) + b2_ref[...]

    # residual + LayerNorm 2 (f32)
    x2 = _layernorm(x1 + ff, ln2g_ref[...], ln2b_ref[...])
    o_ref[...] = x2.astype(o_ref.dtype)


def transformer_block(x, params, *, num_heads):
    B, S, H = x.shape
    I = params["w1"].shape[-1]
    assert H % num_heads == 0
    hd = H // num_heads

    # query-tile size: full sequence if small, else 128-aligned tiles
    if S <= 128:
        ts = S
    else:
        assert S % 128 == 0, "sequence length must be a multiple of 128 when > 128"
        ts = 128
    n_q = S // ts

    f32, bf16 = jnp.float32, jnp.bfloat16
    scale = 1.0 / math.sqrt(hd)

    # Fused QKV weight/bias (Q slice pre-scaled); MXU weights in bf16.
    wqkv = jnp.concatenate(
        [params["wq"] * scale, params["wk"], params["wv"]], axis=1).astype(bf16)   # (H, 3H)
    bqkv = jnp.concatenate(
        [params["bq"] * scale, params["bk"], params["bv"]], axis=1).astype(f32)    # (1, 3H)
    wo = params["wo"].astype(bf16)
    w1 = params["w1"].astype(bf16)
    w2 = params["w2"].astype(bf16)

    def const2(shape):
        return pl.BlockSpec(shape, lambda b, qi: (0, 0))

    kernel = functools.partial(transformer_block_kernel, num_heads=num_heads, ts=ts)

    flops = B * (2 * S * H * 3 * H        # fused QKV
                 + 4 * S * S * H          # scores + context
                 + 2 * S * H * H          # output projection
                 + 4 * S * H * I)         # FFN
    transcendentals = B * (num_heads * S * S + S * I)
    bytes_accessed = (2 * B * S * H * 4
                      + 2 * (wqkv.size + wo.size + w1.size + w2.size)
                      + 4 * (3 * H + H + I + H + 4 * H))

    return pl.pallas_call(
        kernel,
        out_shape=jax.ShapeDtypeStruct((B, S, H), x.dtype),
        grid_spec=pltpu.PrefetchScalarGridSpec(
            num_scalar_prefetch=0,
            grid=(B, n_q),
            in_specs=[
                pl.BlockSpec((None, S, H), lambda b, qi: (b, 0, 0)),   # x (full seq per batch)
                const2((H, 3 * H)), const2((1, 3 * H)),                # fused QKV W, b
                const2((H, H)), const2((1, H)),                        # out proj W, b
                const2((1, H)), const2((1, H)),                        # LN1 gamma, beta
                const2((H, I)), const2((1, I)),                        # FFN linear1 W, b
                const2((I, H)), const2((1, H)),                        # FFN linear2 W, b
                const2((1, H)), const2((1, H)),                        # LN2 gamma, beta
            ],
            out_specs=pl.BlockSpec((None, ts, H), lambda b, qi: (b, qi, 0)),
            scratch_shapes=[
                pltpu.VMEM((S, H), bf16),   # Q (pre-scaled)
                pltpu.VMEM((S, H), bf16),   # K
                pltpu.VMEM((S, H), bf16),   # V
            ],
        ),
        compiler_params=pltpu.CompilerParams(
            dimension_semantics=("parallel", "arbitrary"),
            vmem_limit_bytes=32 * 1024 * 1024),
        cost_estimate=pl.CostEstimate(flops=flops,
                                      transcendentals=transcendentals,
                                      bytes_accessed=bytes_accessed),
    )(
        x,
        wqkv, bqkv, wo, params["bo"].astype(f32),
        params["ln1_g"], params["ln1_b"],
        w1, params["b1"].astype(f32), w2, params["b2"].astype(f32),
        params["ln2_g"], params["ln2_b"],
    )


# ---------------- pure-JAX reference (f32, matches the PyTorch module) ----------------
def reference_forward(x, p, *, num_heads):
    B, S, H = x.shape
    hd = H // num_heads

    def ln(v, g, b, eps=1e-5):
        mu = v.mean(-1, keepdims=True)
        var = ((v - mu) ** 2).mean(-1, keepdims=True)
        return (v - mu) / jnp.sqrt(var + eps) * g + b

    q = x @ p["wq"] + p["bq"]
    k = x @ p["wk"] + p["bk"]
    v = x @ p["wv"] + p["bv"]
    q = q.reshape(B, S, num_heads, hd).transpose(0, 2, 1, 3)
    k = k.reshape(B, S, num_heads, hd).transpose(0, 2, 1, 3)
    v = v.reshape(B, S, num_heads, hd).transpose(0, 2, 1, 3)
    scores = jnp.einsum("bhqd,bhkd->bhqk", q, k) / math.sqrt(hd)
    probs = jax.nn.softmax(scores, axis=-1)
    ctx = jnp.einsum("bhqk,bhkd->bhqd", probs, v)
    ctx = ctx.transpose(0, 2, 1, 3).reshape(B, S, H)
    attn_out = ctx @ p["wo"] + p["bo"]
    x1 = ln(x + attn_out, p["ln1_g"], p["ln1_b"])
    h = jax.nn.gelu(x1 @ p["w1"] + p["b1"], approximate=False)
    ff = h @ p["w2"] + p["b2"]
    return ln(x1 + ff, p["ln2_g"], p["ln2_b"])


if __name__ == "__main__":
    # Small shapes consistent with the module's forward.
    B, S, H = 2, 8, 32
    num_heads = 4
    intermediate = 64

    key = jax.random.PRNGKey(0)
    keys = jax.random.split(key, 24)
    ki = iter(keys)

    def init(shape, scale=0.05):
        return (scale * jax.random.normal(next(ki), shape)).astype(jnp.float32)

    params = {
        # attention linears stored as (in, out) so kernel computes x @ W + b
        "wq": init((H, H)), "bq": init((1, H)),
        "wk": init((H, H)), "bk": init((1, H)),
        "wv": init((H, H)), "bv": init((1, H)),
        "wo": init((H, H)), "bo": init((1, H)),
        "ln1_g": (1.0 + init((1, H), 0.1)), "ln1_b": init((1, H), 0.1),
        # feed-forward
        "w1": init((H, intermediate)), "b1": init((1, intermediate)),
        "w2": init((intermediate, H)), "b2": init((1, H)),
        "ln2_g": (1.0 + init((1, H), 0.1)), "ln2_b": init((1, H), 0.1),
    }

    x = jax.random.normal(next(ki), (B, S, H), dtype=jnp.float32)

    out = transformer_block(x, params, num_heads=num_heads)
    out = jax.block_until_ready(out)

    ref = reference_forward(x, params, num_heads=num_heads)
    assert out.shape == (B, S, H)
    # bf16 MXU operands + approx reciprocal -> relaxed tolerance vs f32 reference
    assert jnp.allclose(out, ref, atol=2e-2, rtol=2e-2), "mismatch vs reference"

    print("KERNEL_OK")
</pallas_src>

<mosaic_0001>
module attributes {stable_mosaic.version = 11 : i64} {
  func.func @transformer_block_kernel(%arg0: i32, %arg1: i32, %arg2: memref<1x8x32xf32, #tpu.memory_space<vmem>>, %arg3: memref<32x96xbf16, #tpu.memory_space<vmem>>, %arg4: memref<1x96xf32, #tpu.memory_space<vmem>>, %arg5: memref<32x32xbf16, #tpu.memory_space<vmem>>, %arg6: memref<1x32xf32, #tpu.memory_space<vmem>>, %arg7: memref<1x32xf32, #tpu.memory_space<vmem>>, %arg8: memref<1x32xf32, #tpu.memory_space<vmem>>, %arg9: memref<32x64xbf16, #tpu.memory_space<vmem>>, %arg10: memref<1x64xf32, #tpu.memory_space<vmem>>, %arg11: memref<64x32xbf16, #tpu.memory_space<vmem>>, %arg12: memref<1x32xf32, #tpu.memory_space<vmem>>, %arg13: memref<1x32xf32, #tpu.memory_space<vmem>>, %arg14: memref<1x32xf32, #tpu.memory_space<vmem>>, %arg15: memref<1x8x32xf32, #tpu.memory_space<vmem>>, %arg16: memref<8x32xbf16, #tpu.memory_space<vmem>>, %arg17: memref<8x32xbf16, #tpu.memory_space<vmem>>, %arg18: memref<8x32xbf16, #tpu.memory_space<vmem>>) attributes {dimension_semantics = [#tpu.dimension_semantics<parallel>, #tpu.dimension_semantics<arbitrary>], iteration_bounds = array<i64: 2, 1>, scalar_prefetch = 0 : i64, scratch_operands = 3 : i64, tpu.core_type = #tpu.core_type<tc>, window_params = [{transform_indices = @transform_0, window_bounds = array<i64: 1, 8, 32>}, {pipeline_mode = #tpu.pipeline_mode<synchronous>, transform_indices = @transform_1, window_bounds = array<i64: 32, 96>}, {pipeline_mode = #tpu.pipeline_mode<synchronous>, transform_indices = @transform_2, window_bounds = array<i64: 1, 96>}, {pipeline_mode = #tpu.pipeline_mode<synchronous>, transform_indices = @transform_3, window_bounds = array<i64: 32, 32>}, {pipeline_mode = #tpu.pipeline_mode<synchronous>, transform_indices = @transform_4, window_bounds = array<i64: 1, 32>}, {pipeline_mode = #tpu.pipeline_mode<synchronous>, transform_indices = @transform_5, window_bounds = array<i64: 1, 32>}, {pipeline_mode = #tpu.pipeline_mode<synchronous>, transform_indices = @transform_6, window_bounds = array<i64: 1, 32>}, {pipeline_mode = #tpu.pipeline_mode<synchronous>, transform_indices = @transform_7, window_bounds = array<i64: 32, 64>}, {pipeline_mode = #tpu.pipeline_mode<synchronous>, transform_indices = @transform_8, window_bounds = array<i64: 1, 64>}, {pipeline_mode = #tpu.pipeline_mode<synchronous>, transform_indices = @transform_9, window_bounds = array<i64: 64, 32>}, {pipeline_mode = #tpu.pipeline_mode<synchronous>, transform_indices = @transform_10, window_bounds = array<i64: 1, 32>}, {pipeline_mode = #tpu.pipeline_mode<synchronous>, transform_indices = @transform_11, window_bounds = array<i64: 1, 32>}, {pipeline_mode = #tpu.pipeline_mode<synchronous>, transform_indices = @transform_12, window_bounds = array<i64: 1, 32>}, {transform_indices = @transform_13, window_bounds = array<i64: 1, 8, 32>}]} {
    %c0_i32 = arith.constant 0 : i32
    %0 = arith.cmpi eq, %arg1, %c0_i32 : i32
    %1 = arith.extui %0 : i1 to i32
    %c0_i32_0 = arith.constant 0 : i32
    %2 = arith.cmpi ne, %1, %c0_i32_0 : i32
    scf.if %2 {
      %c0_74 = arith.constant 0 : index
      %c0_75 = arith.constant 0 : index
      %c0_76 = arith.constant 0 : index
      %168 = vector.load %arg2[%c0_74, %c0_75, %c0_76] : memref<1x8x32xf32, #tpu.memory_space<vmem>>, vector<1x8x32xf32>
      %169 = vector.shape_cast %168 : vector<1x8x32xf32> to vector<8x32xf32>
      %170 = arith.truncf %169 : vector<8x32xf32> to vector<8x32xbf16>
      %c0_77 = arith.constant 0 : index
      %c0_78 = arith.constant 0 : index
      %171 = vector.load %arg3[%c0_77, %c0_78] : memref<32x96xbf16, #tpu.memory_space<vmem>>, vector<32x96xbf16>
      %cst_79 = arith.constant dense<0.000000e+00> : vector<8x96xf32>
      %172 = tpu.matmul %170, %171, %cst_79 {dimension_numbers = #tpu.dot_dimension_numbers<[1], [0], [0], [1], [0, 0, 1, 1], [], []>} : vector<8x32xbf16>, vector<32x96xbf16>, vector<8x96xf32> -> vector<8x96xf32>
      %c0_80 = arith.constant 0 : index
      %c0_81 = arith.constant 0 : index
      %173 = vector.load %arg4[%c0_80, %c0_81] : memref<1x96xf32, #tpu.memory_space<vmem>>, vector<1x96xf32>
      %174 = vector.broadcast %173 : vector<1x96xf32> to vector<8x96xf32>
      %175 = arith.addf %172, %174 : vector<8x96xf32>
      %176 = arith.truncf %175 : vector<8x96xf32> to vector<8x96xbf16>
      %177 = vector.extract_strided_slice %176 {offsets = [0, 0], sizes = [8, 32], strides = [1, 1]} : vector<8x96xbf16> to vector<8x32xbf16>
      %c0_82 = arith.constant 0 : index
      %c0_83 = arith.constant 0 : index
      %178 = vector.load %arg16[%c0_82, %c0_83] : memref<8x32xbf16, #tpu.memory_space<vmem>>, vector<8x32xbf16>
      tpu.vector_store %arg16[%c0_82, %c0_83], %177 {strides = array<i32>} : memref<8x32xbf16, #tpu.memory_space<vmem>>, vector<8x32xbf16>,
      %179 = vector.extract_strided_slice %176 {offsets = [0, 32], sizes = [8, 32], strides = [1, 1]} : vector<8x96xbf16> to vector<8x32xbf16>
      %c0_84 = arith.constant 0 : index
      %c0_85 = arith.constant 0 : index
      %180 = vector.load %arg17[%c0_84, %c0_85] : memref<8x32xbf16, #tpu.memory_space<vmem>>, vector<8x32xbf16>
      tpu.vector_store %arg17[%c0_84, %c0_85], %179 {strides = array<i32>} : memref<8x32xbf16, #tpu.memory_space<vmem>>, vector<8x32xbf16>,
      %181 = vector.extract_strided_slice %176 {offsets = [0, 64], sizes = [8, 32], strides = [1, 1]} : vector<8x96xbf16> to vector<8x32xbf16>
      %c0_86 = arith.constant 0 : index
      %c0_87 = arith.constant 0 : index
      %182 = vector.load %arg18[%c0_86, %c0_87] : memref<8x32xbf16, #tpu.memory_space<vmem>>, vector<8x32xbf16>
      tpu.vector_store %arg18[%c0_86, %c0_87], %181 {strides = array<i32>} : memref<8x32xbf16, #tpu.memory_space<vmem>>, vector<8x32xbf16>,
    } else {
    }
    %c8_i32 = arith.constant 8 : i32
    %3 = arith.muli %arg1, %c8_i32 : i32
    %4 = tpu.assume_multiple %3, 8 : i32
    %5 = arith.index_cast %4 : i32 to index
    %c0 = arith.constant 0 : index
    %6 = vector.load %arg16[%5, %c0] : memref<8x32xbf16, #tpu.memory_space<vmem>>, vector<8x32xbf16>
    %c0_1 = arith.constant 0 : index
    %c0_2 = arith.constant 0 : index
    %7 = vector.load %arg5[%c0_1, %c0_2] : memref<32x32xbf16, #tpu.memory_space<vmem>>, vector<32x32xbf16>
    %cst = arith.constant 0.000000e+00 : f32
    %8 = vector.broadcast %cst : f32 to vector<8x32xf32>
    %9 = vector.extract_strided_slice %6 {offsets = [0, 0], sizes = [8, 8], strides = [1, 1]} : vector<8x32xbf16> to vector<8x8xbf16>
    %c0_3 = arith.constant 0 : index
    %c0_4 = arith.constant 0 : index
    %10 = vector.load %arg17[%c0_3, %c0_4] : memref<8x32xbf16, #tpu.memory_space<vmem>>, vector<8x8xbf16>
    %c0_5 = arith.constant 0 : index
    %c0_6 = arith.constant 0 : index
    %11 = vector.load %arg18[%c0_5, %c0_6] : memref<8x32xbf16, #tpu.memory_space<vmem>>, vector<8x8xbf16>
    %cst_7 = arith.constant dense<0.000000e+00> : vector<8x8xf32>
    %12 = tpu.matmul %9, %10, %cst_7 {dimension_numbers = #tpu.dot_dimension_numbers<[1], [1], [0], [0], [0, 0, 1, 0], [], []>} : vector<8x8xbf16>, vector<8x8xbf16>, vector<8x8xf32> -> vector<8x8xf32>
    %cst_8 = arith.constant dense<0xFF800000> : vector<8xf32>
    %13 = vector.multi_reduction <maximumf>, %12, %cst_8 [1] : vector<8x8xf32> to vector<8xf32>
    %14 = vector.shape_cast %13 : vector<8xf32> to vector<8x1xf32>
    %15 = vector.broadcast %14 : vector<8x1xf32> to vector<8x8xf32>
    %16 = arith.subf %12, %15 : vector<8x8xf32>
    %17 = math.exp %16 : vector<8x8xf32>
    %cst_9 = arith.constant dense<0.000000e+00> : vector<8xf32>
    %18 = vector.multi_reduction <add>, %17, %cst_9 [1] : vector<8x8xf32> to vector<8xf32>
    %19 = vector.shape_cast %18 : vector<8xf32> to vector<8x1xf32>
    %20 = tpu.reciprocal %19 {approx = true} : vector<8x1xf32> -> vector<8x1xf32>
    %21 = vector.broadcast %20 : vector<8x1xf32> to vector<8x8xf32>
    %22 = arith.mulf %17, %21 : vector<8x8xf32>
    %23 = arith.truncf %22 : vector<8x8xf32> to vector<8x8xbf16>
    %cst_10 = arith.constant dense<0.000000e+00> : vector<8x8xf32>
    %24 = tpu.matmul %23, %11, %cst_10 {dimension_numbers = #tpu.dot_dimension_numbers<[1], [0], [0], [1], [0, 0, 1, 1], [], []>} : vector<8x8xbf16>, vector<8x8xbf16>, vector<8x8xf32> -> vector<8x8xf32>
    %25 = arith.truncf %24 : vector<8x8xf32> to vector<8x8xbf16>
    %26 = vector.extract_strided_slice %7 {offsets = [0, 0], sizes = [8, 32], strides = [1, 1]} : vector<32x32xbf16> to vector<8x32xbf16>
    %cst_11 = arith.constant dense<0.000000e+00> : vector<8x32xf32>
    %27 = tpu.matmul %25, %26, %cst_11 {dimension_numbers = #tpu.dot_dimension_numbers<[1], [0], [0], [1], [0, 0, 1, 1], [], []>} : vector<8x8xbf16>, vector<8x32xbf16>, vector<8x32xf32> -> vector<8x32xf32>
    %28 = arith.addf %8, %27 : vector<8x32xf32>
    %29 = vector.extract_strided_slice %6 {offsets = [0, 8], sizes = [8, 8], strides = [1, 1]} : vector<8x32xbf16> to vector<8x8xbf16>
    %c0_12 = arith.constant 0 : index
    %c8 = arith.constant 8 : index
    %30 = vector.load %arg17[%c0_12, %c8] : memref<8x32xbf16, #tpu.memory_space<vmem>>, vector<8x8xbf16>
    %c0_13 = arith.constant 0 : index
    %c8_14 = arith.constant 8 : index
    %31 = vector.load %arg18[%c0_13, %c8_14] : memref<8x32xbf16, #tpu.memory_space<vmem>>, vector<8x8xbf16>
    %cst_15 = arith.constant dense<0.000000e+00> : vector<8x8xf32>
    %32 = tpu.matmul %29, %30, %cst_15 {dimension_numbers = #tpu.dot_dimension_numbers<[1], [1], [0], [0], [0, 0, 1, 0], [], []>} : vector<8x8xbf16>, vector<8x8xbf16>, vector<8x8xf32> -> vector<8x8xf32>
    %cst_16 = arith.constant dense<0xFF800000> : vector<8xf32>
    %33 = vector.multi_reduction <maximumf>, %32, %cst_16 [1] : vector<8x8xf32> to vector<8xf32>
    %34 = vector.shape_cast %33 : vector<8xf32> to vector<8x1xf32>
    %35 = vector.broadcast %34 : vector<8x1xf32> to vector<8x8xf32>
    %36 = arith.subf %32, %35 : vector<8x8xf32>
    %37 = math.exp %36 : vector<8x8xf32>
    %cst_17 = arith.constant dense<0.000000e+00> : vector<8xf32>
    %38 = vector.multi_reduction <add>, %37, %cst_17 [1] : vector<8x8xf32> to vector<8xf32>
    %39 = vector.shape_cast %38 : vector<8xf32> to vector<8x1xf32>
    %40 = tpu.reciprocal %39 {approx = true} : vector<8x1xf32> -> vector<8x1xf32>
    %41 = vector.broadcast %40 : vector<8x1xf32> to vector<8x8xf32>
    %42 = arith.mulf %37, %41 : vector<8x8xf32>
    %43 = arith.truncf %42 : vector<8x8xf32> to vector<8x8xbf16>
    %cst_18 = arith.constant dense<0.000000e+00> : vector<8x8xf32>
    %44 = tpu.matmul %43, %31, %cst_18 {dimension_numbers = #tpu.dot_dimension_numbers<[1], [0], [0], [1], [0, 0, 1, 1], [], []>} : vector<8x8xbf16>, vector<8x8xbf16>, vector<8x8xf32> -> vector<8x8xf32>
    %45 = arith.truncf %44 : vector<8x8xf32> to vector<8x8xbf16>
    %46 = vector.extract_strided_slice %7 {offsets = [8, 0], sizes = [8, 32], strides = [1, 1]} : vector<32x32xbf16> to vector<8x32xbf16>
    %cst_19 = arith.constant dense<0.000000e+00> : vector<8x32xf32>
    %47 = tpu.matmul %45, %46, %cst_19 {dimension_numbers = #tpu.dot_dimension_numbers<[1], [0], [0], [1], [0, 0, 1, 1], [], []>} : vector<8x8xbf16>, vector<8x32xbf16>, vector<8x32xf32> -> vector<8x32xf32>
    %48 = arith.addf %28, %47 : vector<8x32xf32>
    %49 = vector.extract_strided_slice %6 {offsets = [0, 16], sizes = [8, 8], strides = [1, 1]} : vector<8x32xbf16> to vector<8x8xbf16>
    %c0_20 = arith.constant 0 : index
    %c16 = arith.constant 16 : index
    %50 = vector.load %arg17[%c0_20, %c16] : memref<8x32xbf16, #tpu.memory_space<vmem>>, vector<8x8xbf16>
    %c0_21 = arith.constant 0 : index
    %c16_22 = arith.constant 16 : index
    %51 = vector.load %arg18[%c0_21, %c16_22] : memref<8x32xbf16, #tpu.memory_space<vmem>>, vector<8x8xbf16>
    %cst_23 = arith.constant dense<0.000000e+00> : vector<8x8xf32>
    %52 = tpu.matmul %49, %50, %cst_23 {dimension_numbers = #tpu.dot_dimension_numbers<[1], [1], [0], [0], [0, 0, 1, 0], [], []>} : vector<8x8xbf16>, vector<8x8xbf16>, vector<8x8xf32> -> vector<8x8xf32>
    %cst_24 = arith.constant dense<0xFF800000> : vector<8xf32>
    %53 = vector.multi_reduction <maximumf>, %52, %cst_24 [1] : vector<8x8xf32> to vector<8xf32>
    %54 = vector.shape_cast %53 : vector<8xf32> to vector<8x1xf32>
    %55 = vector.broadcast %54 : vector<8x1xf32> to vector<8x8xf32>
    %56 = arith.subf %52, %55 : vector<8x8xf32>
    %57 = math.exp %56 : vector<8x8xf32>
    %cst_25 = arith.constant dense<0.000000e+00> : vector<8xf32>
    %58 = vector.multi_reduction <add>, %57, %cst_25 [1] : vector<8x8xf32> to vector<8xf32>
    %59 = vector.shape_cast %58 : vector<8xf32> to vector<8x1xf32>
    %60 = tpu.reciprocal %59 {approx = true} : vector<8x1xf32> -> vector<8x1xf32>
    %61 = vector.broadcast %60 : vector<8x1xf32> to vector<8x8xf32>
    %62 = arith.mulf %57, %61 : vector<8x8xf32>
    %63 = arith.truncf %62 : vector<8x8xf32> to vector<8x8xbf16>
    %cst_26 = arith.constant dense<0.000000e+00> : vector<8x8xf32>
    %64 = tpu.matmul %63, %51, %cst_26 {dimension_numbers = #tpu.dot_dimension_numbers<[1], [0], [0], [1], [0, 0, 1, 1], [], []>} : vector<8x8xbf16>, vector<8x8xbf16>, vector<8x8xf32> -> vector<8x8xf32>
    %65 = arith.truncf %64 : vector<8x8xf32> to vector<8x8xbf16>
    %66 = vector.extract_strided_slice %7 {offsets = [16, 0], sizes = [8, 32], strides = [1, 1]} : vector<32x32xbf16> to vector<8x32xbf16>
    %cst_27 = arith.constant dense<0.000000e+00> : vector<8x32xf32>
    %67 = tpu.matmul %65, %66, %cst_27 {dimension_numbers = #tpu.dot_dimension_numbers<[1], [0], [0], [1], [0, 0, 1, 1], [], []>} : vector<8x8xbf16>, vector<8x32xbf16>, vector<8x32xf32> -> vector<8x32xf32>
    %68 = arith.addf %48, %67 : vector<8x32xf32>
    %69 = vector.extract_strided_slice %6 {offsets = [0, 24], sizes = [8, 8], strides = [1, 1]} : vector<8x32xbf16> to vector<8x8xbf16>
    %c0_28 = arith.constant 0 : index
    %c24 = arith.constant 24 : index
    %70 = vector.load %arg17[%c0_28, %c24] : memref<8x32xbf16, #tpu.memory_space<vmem>>, vector<8x8xbf16>
    %c0_29 = arith.constant 0 : index
    %c24_30 = arith.constant 24 : index
    %71 = vector.load %arg18[%c0_29, %c24_30] : memref<8x32xbf16, #tpu.memory_space<vmem>>, vector<8x8xbf16>
    %cst_31 = arith.constant dense<0.000000e+00> : vector<8x8xf32>
    %72 = tpu.matmul %69, %70, %cst_31 {dimension_numbers = #tpu.dot_dimension_numbers<[1], [1], [0], [0], [0, 0, 1, 0], [], []>} : vector<8x8xbf16>, vector<8x8xbf16>, vector<8x8xf32> -> vector<8x8xf32>
    %cst_32 = arith.constant dense<0xFF800000> : vector<8xf32>
    %73 = vector.multi_reduction <maximumf>, %72, %cst_32 [1] : vector<8x8xf32> to vector<8xf32>
    %74 = vector.shape_cast %73 : vector<8xf32> to vector<8x1xf32>
    %75 = vector.broadcast %74 : vector<8x1xf32> to vector<8x8xf32>
    %76 = arith.subf %72, %75 : vector<8x8xf32>
    %77 = math.exp %76 : vector<8x8xf32>
    %cst_33 = arith.constant dense<0.000000e+00> : vector<8xf32>
    %78 = vector.multi_reduction <add>, %77, %cst_33 [1] : vector<8x8xf32> to vector<8xf32>
    %79 = vector.shape_cast %78 : vector<8xf32> to vector<8x1xf32>
    %80 = tpu.reciprocal %79 {approx = true} : vector<8x1xf32> -> vector<8x1xf32>
    %81 = vector.broadcast %80 : vector<8x1xf32> to vector<8x8xf32>
    %82 = arith.mulf %77, %81 : vector<8x8xf32>
    %83 = arith.truncf %82 : vector<8x8xf32> to vector<8x8xbf16>
    %cst_34 = arith.constant dense<0.000000e+00> : vector<8x8xf32>
    %84 = tpu.matmul %83, %71, %cst_34 {dimension_numbers = #tpu.dot_dimension_numbers<[1], [0], [0], [1], [0, 0, 1, 1], [], []>} : vector<8x8xbf16>, vector<8x8xbf16>, vector<8x8xf32> -> vector<8x8xf32>
    %85 = arith.truncf %84 : vector<8x8xf32> to vector<8x8xbf16>
    %86 = vector.extract_strided_slice %7 {offsets = [24, 0], sizes = [8, 32], strides = [1, 1]} : vector<32x32xbf16> to vector<8x32xbf16>
    %cst_35 = arith.constant dense<0.000000e+00> : vector<8x32xf32>
    %87 = tpu.matmul %85, %86, %cst_35 {dimension_numbers = #tpu.dot_dimension_numbers<[1], [0], [0], [1], [0, 0, 1, 1], [], []>} : vector<8x8xbf16>, vector<8x32xbf16>, vector<8x32xf32> -> vector<8x32xf32>
    %88 = arith.addf %68, %87 : vector<8x32xf32>
    %c0_36 = arith.constant 0 : index
    %c0_37 = arith.constant 0 : index
    %89 = vector.load %arg6[%c0_36, %c0_37] : memref<1x32xf32, #tpu.memory_space<vmem>>, vector<1x32xf32>
    %90 = vector.broadcast %89 : vector<1x32xf32> to vector<8x32xf32>
    %91 = arith.addf %88, %90 : vector<8x32xf32>
    %c0_38 = arith.constant 0 : index
    %92 = arith.index_cast %4 : i32 to index
    %c0_39 = arith.constant 0 : index
    %93 = vector.load %arg2[%c0_38, %92, %c0_39] : memref<1x8x32xf32, #tpu.memory_space<vmem>>, vector<1x8x32xf32>
    %94 = vector.shape_cast %93 : vector<1x8x32xf32> to vector<8x32xf32>
    %95 = arith.addf %94, %91 : vector<8x32xf32>
    %c0_40 = arith.constant 0 : index
    %c0_41 = arith.constant 0 : index
    %96 = vector.load %arg7[%c0_40, %c0_41] : memref<1x32xf32, #tpu.memory_space<vmem>>, vector<1x32xf32>
    %c0_42 = arith.constant 0 : index
    %c0_43 = arith.constant 0 : index
    %97 = vector.load %arg8[%c0_42, %c0_43] : memref<1x32xf32, #tpu.memory_space<vmem>>, vector<1x32xf32>
    %cst_44 = arith.constant dense<0.000000e+00> : vector<8xf32>
    %98 = vector.multi_reduction <add>, %95, %cst_44 [1] : vector<8x32xf32> to vector<8xf32>
    %99 = vector.shape_cast %98 : vector<8xf32> to vector<8x1xf32>
    %cst_45 = arith.constant 3.200000e+01 : f32
    %100 = vector.broadcast %cst_45 : f32 to vector<8x1xf32>
    %101 = arith.divf %99, %100 : vector<8x1xf32>
    %102 = vector.broadcast %101 : vector<8x1xf32> to vector<8x32xf32>
    %103 = arith.subf %95, %102 : vector<8x32xf32>
    %104 = arith.mulf %103, %103 : vector<8x32xf32>
    %cst_46 = arith.constant dense<0.000000e+00> : vector<8xf32>
    %105 = vector.multi_reduction <add>, %104, %cst_46 [1] : vector<8x32xf32> to vector<8xf32>
    %106 = vector.shape_cast %105 : vector<8xf32> to vector<8x1xf32>
    %cst_47 = arith.constant 3.200000e+01 : f32
    %107 = vector.broadcast %cst_47 : f32 to vector<8x1xf32>
    %108 = arith.divf %106, %107 : vector<8x1xf32>
    %109 = vector.broadcast %101 : vector<8x1xf32> to vector<8x32xf32>
    %110 = arith.subf %95, %109 : vector<8x32xf32>
    %cst_48 = arith.constant 9.99999974E-6 : f32
    %111 = vector.broadcast %cst_48 : f32 to vector<8x1xf32>
    %112 = arith.addf %108, %111 : vector<8x1xf32>
    %113 = math.rsqrt %112 : vector<8x1xf32>
    %114 = vector.broadcast %113 : vector<8x1xf32> to vector<8x32xf32>
    %115 = arith.mulf %110, %114 : vector<8x32xf32>
    %116 = vector.broadcast %96 : vector<1x32xf32> to vector<8x32xf32>
    %117 = arith.mulf %115, %116 : vector<8x32xf32>
    %118 = vector.broadcast %97 : vector<1x32xf32> to vector<8x32xf32>
    %119 = arith.addf %117, %118 : vector<8x32xf32>
    %120 = arith.truncf %119 : vector<8x32xf32> to vector<8x32xbf16>
    %c0_49 = arith.constant 0 : index
    %c0_50 = arith.constant 0 : index
    %121 = vector.load %arg9[%c0_49, %c0_50] : memref<32x64xbf16, #tpu.memory_space<vmem>>, vector<32x64xbf16>
    %cst_51 = arith.constant dense<0.000000e+00> : vector<8x64xf32>
    %122 = tpu.matmul %120, %121, %cst_51 {dimension_numbers = #tpu.dot_dimension_numbers<[1], [0], [0], [1], [0, 0, 1, 1], [], []>} : vector<8x32xbf16>, vector<32x64xbf16>, vector<8x64xf32> -> vector<8x64xf32>
    %c0_52 = arith.constant 0 : index
    %c0_53 = arith.constant 0 : index
    %123 = vector.load %arg10[%c0_52, %c0_53] : memref<1x64xf32, #tpu.memory_space<vmem>>, vector<1x64xf32>
    %124 = vector.broadcast %123 : vector<1x64xf32> to vector<8x64xf32>
    %125 = arith.addf %122, %124 : vector<8x64xf32>
    %cst_54 = arith.constant 5.000000e-01 : f32
    %126 = vector.broadcast %cst_54 : f32 to vector<8x64xf32>
    %127 = arith.mulf %126, %125 : vector<8x64xf32>
    %cst_55 = arith.constant 0.707106769 : f32
    %128 = vector.broadcast %cst_55 : f32 to vector<8x64xf32>
    %129 = arith.mulf %125, %128 : vector<8x64xf32>
    %130 = math.erf %129 : vector<8x64xf32>
    %cst_56 = arith.constant 1.000000e+00 : f32
    %131 = vector.broadcast %cst_56 : f32 to vector<8x64xf32>
    %132 = arith.addf %131, %130 : vector<8x64xf32>
    %133 = arith.mulf %127, %132 : vector<8x64xf32>
    %134 = arith.truncf %133 : vector<8x64xf32> to vector<8x64xbf16>
    %c0_57 = arith.constant 0 : index
    %c0_58 = arith.constant 0 : index
    %135 = vector.load %arg11[%c0_57, %c0_58] : memref<64x32xbf16, #tpu.memory_space<vmem>>, vector<64x32xbf16>
    %cst_59 = arith.constant dense<0.000000e+00> : vector<8x32xf32>
    %136 = tpu.matmul %134, %135, %cst_59 {dimension_numbers = #tpu.dot_dimension_numbers<[1], [0], [0], [1], [0, 0, 1, 1], [], []>} : vector<8x64xbf16>, vector<64x32xbf16>, vector<8x32xf32> -> vector<8x32xf32>
    %c0_60 = arith.constant 0 : index
    %c0_61 = arith.constant 0 : index
    %137 = vector.load %arg12[%c0_60, %c0_61] : memref<1x32xf32, #tpu.memory_space<vmem>>, vector<1x32xf32>
    %138 = vector.broadcast %137 : vector<1x32xf32> to vector<8x32xf32>
    %139 = arith.addf %136, %138 : vector<8x32xf32>
    %140 = arith.addf %119, %139 : vector<8x32xf32>
    %c0_62 = arith.constant 0 : index
    %c0_63 = arith.constant 0 : index
    %141 = vector.load %arg13[%c0_62, %c0_63] : memref<1x32xf32, #tpu.memory_space<vmem>>, vector<1x32xf32>
    %c0_64 = arith.constant 0 : index
    %c0_65 = arith.constant 0 : index
    %142 = vector.load %arg14[%c0_64, %c0_65] : memref<1x32xf32, #tpu.memory_space<vmem>>, vector<1x32xf32>
    %cst_66 = arith.constant dense<0.000000e+00> : vector<8xf32>
    %143 = vector.multi_reduction <add>, %140, %cst_66 [1] : vector<8x32xf32> to vector<8xf32>
    %144 = vector.shape_cast %143 : vector<8xf32> to vector<8x1xf32>
    %cst_67 = arith.constant 3.200000e+01 : f32
    %145 = vector.broadcast %cst_67 : f32 to vector<8x1xf32>
    %146 = arith.divf %144, %145 : vector<8x1xf32>
    %147 = vector.broadcast %146 : vector<8x1xf32> to vector<8x32xf32>
    %148 = arith.subf %140, %147 : vector<8x32xf32>
    %149 = arith.mulf %148, %148 : vector<8x32xf32>
    %cst_68 = arith.constant dense<0.000000e+00> : vector<8xf32>
    %150 = vector.multi_reduction <add>, %149, %cst_68 [1] : vector<8x32xf32> to vector<8xf32>
    %151 = vector.shape_cast %150 : vector<8xf32> to vector<8x1xf32>
    %cst_69 = arith.constant 3.200000e+01 : f32
    %152 = vector.broadcast %cst_69 : f32 to vector<8x1xf32>
    %153 = arith.divf %151, %152 : vector<8x1xf32>
    %154 = vector.broadcast %146 : vector<8x1xf32> to vector<8x32xf32>
    %155 = arith.subf %140, %154 : vector<8x32xf32>
    %cst_70 = arith.constant 9.99999974E-6 : f32
    %156 = vector.broadcast %cst_70 : f32 to vector<8x1xf32>
    %157 = arith.addf %153, %156 : vector<8x1xf32>
    %158 = math.rsqrt %157 : vector<8x1xf32>
    %159 = vector.broadcast %158 : vector<8x1xf32> to vector<8x32xf32>
    %160 = arith.mulf %155, %159 : vector<8x32xf32>
    %161 = vector.broadcast %141 : vector<1x32xf32> to vector<8x32xf32>
    %162 = arith.mulf %160, %161 : vector<8x32xf32>
    %163 = vector.broadcast %142 : vector<1x32xf32> to vector<8x32xf32>
    %164 = arith.addf %162, %163 : vector<8x32xf32>
    %c0_71 = arith.constant 0 : index
    %c0_72 = arith.constant 0 : index
    %c0_73 = arith.constant 0 : index
    %165 = vector.load %arg15[%c0_71, %c0_72, %c0_73] : memref<1x8x32xf32, #tpu.memory_space<vmem>>, vector<1x8x32xf32>
    %166 = vector.shape_cast %165 : vector<1x8x32xf32> to vector<8x32xf32>
    %167 = vector.shape_cast %164 : vector<8x32xf32> to vector<1x8x32xf32>
    tpu.vector_store %arg15[%c0_71, %c0_72, %c0_73], %167 {strides = array<i32>} : memref<1x8x32xf32, #tpu.memory_space<vmem>>, vector<1x8x32xf32>,
    return
  }
  func.func @transform_0(%arg0: i32, %arg1: i32) -> (i32, i32, i32) {
    %c0_i32 = arith.constant 0 : i32
    %c0_i32_0 = arith.constant 0 : i32
    %c0_i32_1 = arith.constant 0 : i32
    return %arg0, %c0_i32, %c0_i32_0 : i32, i32, i32
  }
  func.func @transform_1(%arg0: i32, %arg1: i32) -> (i32, i32) {
    %c0_i32 = arith.constant 0 : i32
    %c0_i32_0 = arith.constant 0 : i32
    %c0_i32_1 = arith.constant 0 : i32
    return %c0_i32, %c0_i32_0 : i32, i32
  }
  func.func @transform_2(%arg0: i32, %arg1: i32) -> (i32, i32) {
    %c0_i32 = arith.constant 0 : i32
    %c0_i32_0 = arith.constant 0 : i32
    %c0_i32_1 = arith.constant 0 : i32
    return %c0_i32, %c0_i32_0 : i32, i32
  }
  func.func @transform_3(%arg0: i32, %arg1: i32) -> (i32, i32) {
    %c0_i32 = arith.constant 0 : i32
    %c0_i32_0 = arith.constant 0 : i32
    %c0_i32_1 = arith.constant 0 : i32
    return %c0_i32, %c0_i32_0 : i32, i32
  }
  func.func @transform_4(%arg0: i32, %arg1: i32) -> (i32, i32) {
    %c0_i32 = arith.constant 0 : i32
    %c0_i32_0 = arith.constant 0 : i32
    %c0_i32_1 = arith.constant 0 : i32
    return %c0_i32, %c0_i32_0 : i32, i32
  }
  func.func @transform_5(%arg0: i32, %arg1: i32) -> (i32, i32) {
    %c0_i32 = arith.constant 0 : i32
    %c0_i32_0 = arith.constant 0 : i32
    %c0_i32_1 = arith.constant 0 : i32
    return %c0_i32, %c0_i32_0 : i32, i32
  }
  func.func @transform_6(%arg0: i32, %arg1: i32) -> (i32, i32) {
    %c0_i32 = arith.constant 0 : i32
    %c0_i32_0 = arith.constant 0 : i32
    %c0_i32_1 = arith.constant 0 : i32
    return %c0_i32, %c0_i32_0 : i32, i32
  }
  func.func @transform_7(%arg0: i32, %arg1: i32) -> (i32, i32) {
    %c0_i32 = arith.constant 0 : i32
    %c0_i32_0 = arith.constant 0 : i32
    %c0_i32_1 = arith.constant 0 : i32
    return %c0_i32, %c0_i32_0 : i32, i32
  }
  func.func @transform_8(%arg0: i32, %arg1: i32) -> (i32, i32) {
    %c0_i32 = arith.constant 0 : i32
    %c0_i32_0 = arith.constant 0 : i32
    %c0_i32_1 = arith.constant 0 : i32
    return %c0_i32, %c0_i32_0 : i32, i32
  }
  func.func @transform_9(%arg0: i32, %arg1: i32) -> (i32, i32) {
    %c0_i32 = arith.constant 0 : i32
    %c0_i32_0 = arith.constant 0 : i32
    %c0_i32_1 = arith.constant 0 : i32
    return %c0_i32, %c0_i32_0 : i32, i32
  }
  func.func @transform_10(%arg0: i32, %arg1: i32) -> (i32, i32) {
    %c0_i32 = arith.constant 0 : i32
    %c0_i32_0 = arith.constant 0 : i32
    %c0_i32_1 = arith.constant 0 : i32
    return %c0_i32, %c0_i32_0 : i32, i32
  }
  func.func @transform_11(%arg0: i32, %arg1: i32) -> (i32, i32) {
    %c0_i32 = arith.constant 0 : i32
    %c0_i32_0 = arith.constant 0 : i32
    %c0_i32_1 = arith.constant 0 : i32
    return %c0_i32, %c0_i32_0 : i32, i32
  }
  func.func @transform_12(%arg0: i32, %arg1: i32) -> (i32, i32) {
    %c0_i32 = arith.constant 0 : i32
    %c0_i32_0 = arith.constant 0 : i32
    %c0_i32_1 = arith.constant 0 : i32
    return %c0_i32, %c0_i32_0 : i32, i32
  }
  func.func @transform_13(%arg0: i32, %arg1: i32) -> (i32, i32, i32) {
    %c0_i32 = arith.constant 0 : i32
    %c0_i32_0 = arith.constant 0 : i32
    return %arg0, %arg1, %c0_i32 : i32, i32, i32
  }
}

</mosaic_0001>

<llo_original>
// kernel: tpu_custom_call.1
$region0: #{tpu_custom_call.1}
  #allocation0 [shape = 'u32[]', space=smem, size = 0x4, offset = 0x4, fixed_abs, tag = 'smem constant byte address 0x4 - core index']
  #allocation1 [shape = 'u32[144,128]{1,0:T(1,128)}', space=vmem, size = 0x12000, scoped, tag = 'internal scratch']
  #allocation2 [shape = 'bf16[8,32]{1,0:T(8,128)(2,1)}', space=vmem, size = 0x800, scoped, tag = 'scratch operand']
  #allocation3 [shape = 'bf16[8,32]{1,0:T(8,128)(2,1)}', space=vmem, size = 0x800, scoped, tag = 'scratch operand']
  #allocation4 [shape = 'bf16[8,32]{1,0:T(8,128)(2,1)}', space=vmem, size = 0x800, scoped, tag = 'scratch operand']
  %s0 = inlined_call_operand.vmem [shape: f32[2,8,32], index: 0, kind: input, shape index: {}]
  %s1 = inlined_call_operand.vmem [shape: bf16[32,96], index: 1, kind: input, shape index: {}]
  %s2 = inlined_call_operand.vmem [shape: f32[1,96], index: 2, kind: input, shape index: {}]
  %s3 = inlined_call_operand.vmem [shape: bf16[32,32], index: 3, kind: input, shape index: {}]
  %s4 = inlined_call_operand.vmem [shape: f32[1,32], index: 4, kind: input, shape index: {}]
  %s5 = inlined_call_operand.vmem [shape: f32[1,32], index: 5, kind: input, shape index: {}]
  %s6 = inlined_call_operand.vmem [shape: f32[1,32], index: 6, kind: input, shape index: {}]
  %s7 = inlined_call_operand.hbm [shape: bf16[32,64], index: 7, kind: input, shape index: {}]
  %s8 = inlined_call_operand.vmem [shape: f32[1,64], index: 8, kind: input, shape index: {}]
  %s9 = inlined_call_operand.vmem [shape: bf16[64,32], index: 9, kind: input, shape index: {}]
  %s10 = inlined_call_operand.vmem [shape: f32[1,32], index: 10, kind: input, shape index: {}]
  %s11 = inlined_call_operand.vmem [shape: f32[1,32], index: 11, kind: input, shape index: {}]
  %s12 = inlined_call_operand.vmem [shape: f32[1,32], index: 12, kind: input, shape index: {}]
  %s13 = inlined_call_operand.hbm [shape: f32[2,8,32], index: 13, kind: output, shape index: {}]
  %s14 = sld [smem:[#allocation0]]
  $region93: #{tpu_custom_call.1} parent=0
    _
  %s16 = ssub.s32 1, %s14
  %s17 = scalar_select 0, %s16, %s14
  $region1: #{tpu_custom_call.1} parent=0
    #allocation5 [shape = 'u8[8192]{0}', space=vmem, size = 0x2000, scoped, tag = 'input window, operand 7, single buffered']
    #allocation6 [shape = 's32[2]{0}', space=sflag, size = 0x8, scoped, tag = 'scoped memory for tpu_custom_call.1']
    #allocation7 [shape = 's32[2]{0}', space=sflag, size = 0x8, scoped, tag = 'scoped memory for tpu_custom_call.1']
    #allocation8 [shape = 'u8[8192]{0}', space=vmem, size = 0x2000, scoped, tag = 'output window, operand 0']
    %18 = vsyncpa [#allocation6], 0
    %19 = vsyncpa [#allocation7], 0
    %s20 = scalar_lea.sflag [#allocation7], 1
    %21 = vsyncpa %s20, 0
    loop: start=0, step=1, limit=4
    $region2: #{tpu_custom_call.1} parent=1 // loop_pre_header
      _
    $region3: #{tpu_custom_call.1} parent=1 // loop_header
      %s23 = sphi 0, %s27
      %p24 = scmp.ge.s32.totalorder %s23, 4
      %s30 = sphi 0, %s42
      %s31 = sphi 0, %s38
      %s32 = sphi 0, %s30
      %s33 = sphi 0, %s31
      %s34 = sphi 0, %s32
      %s35 = sphi 0, %s33
      %s45 = sphi 0, %s47
      %s48 = sphi 0, %s45
      %s49 = sphi 0, %s48
      %s65 = sphi 0, %s49
      %s69 = sphi 0, %s69
      %s71 = sphi 0, %s69
      %s72 = sphi 0, %s71
      %s86 = sphi 0, %s72
      %s90 = sphi 0, %s90
      %s92 = sphi 0, %s90
      %s93 = sphi 0, %s92
      %s107 = sphi 0, %s93
      %s111 = sphi 0, %s111
      %s113 = sphi 0, %s111
      %s114 = sphi 0, %s113
      %s128 = sphi 0, %s114
      %s132 = sphi 0, %s132
      %s134 = sphi 0, %s132
      %s135 = sphi 0, %s134
      %s149 = sphi 0, %s135
      %s153 = sphi 0, %s153
      %s155 = sphi 0, %s153
      %s156 = sphi 0, %s155
      %s170 = sphi 0, %s156
      %s174 = sphi 0, %s174
      %s176 = sphi 0, %s174
      %s177 = sphi 0, %s176
      %s191 = sphi 0, %s177
      %s195 = sphi 0, %s195
      %s197 = sphi 0, %s195
      %s198 = sphi 0, %s197
      %s212 = sphi 0, %s198
      %s216 = sphi 0, %s216
      %s218 = sphi 0, %s216
      %s219 = sphi 0, %s218
      %s233 = sphi 0, %s219
      %s237 = sphi 0, %s237
      %s239 = sphi 0, %s237
      %s240 = sphi 0, %s239
      %s254 = sphi 0, %s240
      %s258 = sphi 0, %s258
      %s260 = sphi 0, %s258
      %s261 = sphi 0, %s260
      %s275 = sphi 0, %s261
      %s279 = sphi 0, %s279
      %s281 = sphi 0, %s279
      %s282 = sphi 0, %s281
      %s296 = sphi 0, %s282
      %s300 = sphi 0, %s300
      %s302 = sphi 0, %s300
      %s303 = sphi 0, %s302
      %s317 = sphi 0, %s303
      %s325 = sphi 0, %s327
      %s328 = sphi 0, %s325
      %s329 = sphi 0, %s328
      %s345 = sphi 0, %s329
    $region4: #{tpu_custom_call.1} parent=1 // loop_header_branch
      %26 = sbr.rel (%p24) target = $region8
    $region5: #{tpu_custom_call.1} parent=1 // loop_body
      %s28 = ssub.s32 %s23, 1
      %s29 = ssub.s32 %s23, 2
      %s36 = sadd.s32 1, %s31
      %p37 = scmp.ge.s32.totalorder %s36, 1
      %s38 = scalar_select %p37, 0, %s36
      %s39 = sadd.s32 1, %s30
      %s40 = scalar_select %p37, %s39, %s30
      %p41 = scmp.ge.s32.totalorder %s40, 2
      %s42 = scalar_select %p41, 0, %s40
      %s43 = ssub.s32 %s30, %s42
      %p44 = scmp.eq.s32.totalorder %s43, 0
      %s46 = sadd.s32 %s45, 1
      %s47 = scalar_select %p44, %s45, %s46
      %p50 = pneg %p44
      %p51 = scmp.eq.s32.totalorder %s23, 1
      %p52 = por %p50, %p51
      %p53 = scmp.ne.s32.totalorder %s45, %s48
      %p54 = scmp.eq.s32.totalorder %s23, 0
      %p55 = por %p53, %p54
      %p56 = scmp.ne.s32.totalorder %s45, %s48
      %p57 = scmp.eq.s32.totalorder %s28, 1
      %p58 = por %p56, %p57
      %p59 = scmp.ne.s32.totalorder %s48, %s49
      %p60 = scmp.eq.s32.totalorder %s28, 0
      %p61 = por %p59, %p60
      %p62 = scmp.ne.s32.totalorder %s48, %s49
      %p63 = scmp.eq.s32.totalorder %s29, 1
      %p64 = por %p62, %p63
      %p66 = scmp.ne.s32.totalorder %s49, %s65
      %p67 = scmp.eq.s32.totalorder %s29, 0
      %p68 = por %p66, %p67
      %s70 = sadd.s32 %s69, 1
      %p73 = scmp.eq.s32.totalorder %s23, 1
      %p74 = scmp.ne.s32.totalorder %s69, %s71
      %p75 = scmp.eq.s32.totalorder %s23, 0
      %p76 = por %p74, %p75
      %p77 = scmp.ne.s32.totalorder %s69, %s71
      %p78 = scmp.eq.s32.totalorder %s28, 1
      %p79 = por %p77, %p78
      %p80 = scmp.ne.s32.totalorder %s71, %s72
      %p81 = scmp.eq.s32.totalorder %s28, 0
      %p82 = por %p80, %p81
      %p83 = scmp.ne.s32.totalorder %s71, %s72
      %p84 = scmp.eq.s32.totalorder %s29, 1
      %p85 = por %p83, %p84
      %p87 = scmp.ne.s32.totalorder %s72, %s86
      %p88 = scmp.eq.s32.totalorder %s29, 0
      %p89 = por %p87, %p88
      %s91 = sadd.s32 %s90, 1
      %p94 = scmp.eq.s32.totalorder %s23, 1
      %p95 = scmp.ne.s32.totalorder %s90, %s92
      %p96 = scmp.eq.s32.totalorder %s23, 0
      %p97 = por %p95, %p96
      %p98 = scmp.ne.s32.totalorder %s90, %s92
      %p99 = scmp.eq.s32.totalorder %s28, 1
      %p100 = por %p98, %p99
      %p101 = scmp.ne.s32.totalorder %s92, %s93
      %p102 = scmp.eq.s32.totalorder %s28, 0
      %p103 = por %p101, %p102
      %p104 = scmp.ne.s32.totalorder %s92, %s93
      %p105 = scmp.eq.s32.totalorder %s29, 1
      %p106 = por %p104, %p105
      %p108 = scmp.ne.s32.totalorder %s93, %s107
      %p109 = scmp.eq.s32.totalorder %s29, 0
      %p110 = por %p108, %p109
      %s112 = sadd.s32 %s111, 1
      %p115 = scmp.eq.s32.totalorder %s23, 1
      %p116 = scmp.ne.s32.totalorder %s111, %s113
      %p117 = scmp.eq.s32.totalorder %s23, 0
      %p118 = por %p116, %p117
      %p119 = scmp.ne.s32.totalorder %s111, %s113
      %p120 = scmp.eq.s32.totalorder %s28, 1
      %p121 = por %p119, %p120
      %p122 = scmp.ne.s32.totalorder %s113, %s114
      %p123 = scmp.eq.s32.totalorder %s28, 0
      %p124 = por %p122, %p123
      %p125 = scmp.ne.s32.totalorder %s113, %s114
      %p126 = scmp.eq.s32.totalorder %s29, 1
      %p127 = por %p125, %p126
      %p129 = scmp.ne.s32.totalorder %s114, %s128
      %p130 = scmp.eq.s32.totalorder %s29, 0
      %p131 = por %p129, %p130
      %s133 = sadd.s32 %s132, 1
      %p136 = scmp.eq.s32.totalorder %s23, 1
      %p137 = scmp.ne.s32.totalorder %s132, %s134
      %p138 = scmp.eq.s32.totalorder %s23, 0
      %p139 = por %p137, %p138
      %p140 = scmp.ne.s32.totalorder %s132, %s134
      %p141 = scmp.eq.s32.totalorder %s28, 1
      %p142 = por %p140, %p141
      %p143 = scmp.ne.s32.totalorder %s134, %s135
      %p144 = scmp.eq.s32.totalorder %s28, 0
      %p145 = por %p143, %p144
      %p146 = scmp.ne.s32.totalorder %s134, %s135
      %p147 = scmp.eq.s32.totalorder %s29, 1
      %p148 = por %p146, %p147
      %p150 = scmp.ne.s32.totalorder %s135, %s149
      %p151 = scmp.eq.s32.totalorder %s29, 0
      %p152 = por %p150, %p151
      %s154 = sadd.s32 %s153, 1
      %p157 = scmp.eq.s32.totalorder %s23, 1
      %p158 = scmp.ne.s32.totalorder %s153, %s155
      %p159 = scmp.eq.s32.totalorder %s23, 0
      %p160 = por %p158, %p159
      %p161 = scmp.ne.s32.totalorder %s153, %s155
      %p162 = scmp.eq.s32.totalorder %s28, 1
      %p163 = por %p161, %p162
      %p164 = scmp.ne.s32.totalorder %s155, %s156
      %p165 = scmp.eq.s32.totalorder %s28, 0
      %p166 = por %p164, %p165
      %p167 = scmp.ne.s32.totalorder %s155, %s156
      %p168 = scmp.eq.s32.totalorder %s29, 1
      %p169 = por %p167, %p168
      %p171 = scmp.ne.s32.totalorder %s156, %s170
      %p172 = scmp.eq.s32.totalorder %s29, 0
      %p173 = por %p171, %p172
      %s175 = sadd.s32 %s174, 1
      %p178 = scmp.eq.s32.totalorder %s23, 1
      %p179 = scmp.ne.s32.totalorder %s174, %s176
      %p180 = scmp.eq.s32.totalorder %s23, 0
      %p181 = por %p179, %p180
      %p182 = scmp.ne.s32.totalorder %s174, %s176
      %p183 = scmp.eq.s32.totalorder %s28, 1
      %p184 = por %p182, %p183
      %p185 = scmp.ne.s32.totalorder %s176, %s177
      %p186 = scmp.eq.s32.totalorder %s28, 0
      %p187 = por %p185, %p186
      %p188 = scmp.ne.s32.totalorder %s176, %s177
      %p189 = scmp.eq.s32.totalorder %s29, 1
      %p190 = por %p188, %p189
      %p192 = scmp.ne.s32.totalorder %s177, %s191
      %p193 = scmp.eq.s32.totalorder %s29, 0
      %p194 = por %p192, %p193
      %s196 = sadd.s32 %s195, 1
      %p199 = scmp.eq.s32.totalorder %s23, 1
      %p200 = scmp.ne.s32.totalorder %s195, %s197
      %p201 = scmp.eq.s32.totalorder %s23, 0
      %p202 = por %p200, %p201
      %p203 = scmp.ne.s32.totalorder %s195, %s197
      %p204 = scmp.eq.s32.totalorder %s28, 1
      %p205 = por %p203, %p204
      %p206 = scmp.ne.s32.totalorder %s197, %s198
      %p207 = scmp.eq.s32.totalorder %s28, 0
      %p208 = por %p206, %p207
      %p209 = scmp.ne.s32.totalorder %s197, %s198
      %p210 = scmp.eq.s32.totalorder %s29, 1
      %p211 = por %p209, %p210
      %p213 = scmp.ne.s32.totalorder %s198, %s212
      %p214 = scmp.eq.s32.totalorder %s29, 0
      %p215 = por %p213, %p214
      %s217 = sadd.s32 %s216, 1
      %p220 = scmp.eq.s32.totalorder %s23, 1
      %p221 = scmp.ne.s32.totalorder %s216, %s218
      %p222 = scmp.eq.s32.totalorder %s23, 0
      %p223 = por %p221, %p222
      %p224 = scmp.ne.s32.totalorder %s216, %s218
      %p225 = scmp.eq.s32.totalorder %s28, 1
      %p226 = por %p224, %p225
      %p227 = scmp.ne.s32.totalorder %s218, %s219
      %p228 = scmp.eq.s32.totalorder %s28, 0
      %p229 = por %p227, %p228
      %p230 = scmp.ne.s32.totalorder %s218, %s219
      %p231 = scmp.eq.s32.totalorder %s29, 1
      %p232 = por %p230, %p231
      %p234 = scmp.ne.s32.totalorder %s219, %s233
      %p235 = scmp.eq.s32.totalorder %s29, 0
      %p236 = por %p234, %p235
      %s238 = sadd.s32 %s237, 1
      %p241 = scmp.eq.s32.totalorder %s23, 1
      %p242 = scmp.ne.s32.totalorder %s237, %s239
      %p243 = scmp.eq.s32.totalorder %s23, 0
      %p244 = por %p242, %p243
      %p245 = scmp.ne.s32.totalorder %s237, %s239
      %p246 = scmp.eq.s32.totalorder %s28, 1
      %p247 = por %p245, %p246
      %p248 = scmp.ne.s32.totalorder %s239, %s240
      %p249 = scmp.eq.s32.totalorder %s28, 0
      %p250 = por %p248, %p249
      %p251 = scmp.ne.s32.totalorder %s239, %s240
      %p252 = scmp.eq.s32.totalorder %s29, 1
      %p253 = por %p251, %p252
      %p255 = scmp.ne.s32.totalorder %s240, %s254
      %p256 = scmp.eq.s32.totalorder %s29, 0
      %p257 = por %p255, %p256
      %s259 = sadd.s32 %s258, 1
      %p262 = scmp.eq.s32.totalorder %s23, 1
      %p263 = scmp.ne.s32.totalorder %s258, %s260
      %p264 = scmp.eq.s32.totalorder %s23, 0
      %p265 = por %p263, %p264
      %p266 = scmp.ne.s32.totalorder %s258, %s260
      %p267 = scmp.eq.s32.totalorder %s28, 1
      %p268 = por %p266, %p267
      %p269 = scmp.ne.s32.totalorder %s260, %s261
      %p270 = scmp.eq.s32.totalorder %s28, 0
      %p271 = por %p269, %p270
      %p272 = scmp.ne.s32.totalorder %s260, %s261
      %p273 = scmp.eq.s32.totalorder %s29, 1
      %p274 = por %p272, %p273
      %p276 = scmp.ne.s32.totalorder %s261, %s275
      %p277 = scmp.eq.s32.totalorder %s29, 0
      %p278 = por %p276, %p277
      %s280 = sadd.s32 %s279, 1
      %p283 = scmp.eq.s32.totalorder %s23, 1
      %p284 = scmp.ne.s32.totalorder %s279, %s281
      %p285 = scmp.eq.s32.totalorder %s23, 0
      %p286 = por %p284, %p285
      %p287 = scmp.ne.s32.totalorder %s279, %s281
      %p288 = scmp.eq.s32.totalorder %s28, 1
      %p289 = por %p287, %p288
      %p290 = scmp.ne.s32.totalorder %s281, %s282
      %p291 = scmp.eq.s32.totalorder %s28, 0
      %p292 = por %p290, %p291
      %p293 = scmp.ne.s32.totalorder %s281, %s282
      %p294 = scmp.eq.s32.totalorder %s29, 1
      %p295 = por %p293, %p294
      %p297 = scmp.ne.s32.totalorder %s282, %s296
      %p298 = scmp.eq.s32.totalorder %s29, 0
      %p299 = por %p297, %p298
      %s301 = sadd.s32 %s300, 1
      %p304 = scmp.eq.s32.totalorder %s23, 1
      %p305 = scmp.ne.s32.totalorder %s300, %s302
      %p306 = scmp.eq.s32.totalorder %s23, 0
      %p307 = por %p305, %p306
      %p308 = scmp.ne.s32.totalorder %s300, %s302
      %p309 = scmp.eq.s32.totalorder %s28, 1
      %p310 = por %p308, %p309
      %p311 = scmp.ne.s32.totalorder %s302, %s303
      %p312 = scmp.eq.s32.totalorder %s28, 0
      %p313 = por %p311, %p312
      %p314 = scmp.ne.s32.totalorder %s302, %s303
      %p315 = scmp.eq.s32.totalorder %s29, 1
      %p316 = por %p314, %p315
      %p318 = scmp.ne.s32.totalorder %s303, %s317
      %p319 = scmp.eq.s32.totalorder %s29, 0
      %p320 = por %p318, %p319
      %s321 = ssub.s32 %s30, %s42
      %s322 = ssub.s32 %s31, %s38
      %s323 = sor.u32 %s321, %s322
      %p324 = scmp.eq.s32.totalorder %s323, 0
      %s326 = sadd.s32 %s325, 1
      %s327 = scalar_select %p324, %s325, %s326
      %p330 = pneg %p324
      %p331 = scmp.eq.s32.totalorder %s23, 1
      %p332 = por %p330, %p331
      %p333 = scmp.ne.s32.totalorder %s325, %s328
      %p334 = scmp.eq.s32.totalorder %s23, 0
      %p335 = por %p333, %p334
      %p336 = scmp.ne.s32.totalorder %s325, %s328
      %p337 = scmp.eq.s32.totalorder %s28, 1
      %p338 = por %p336, %p337
      %p339 = scmp.ne.s32.totalorder %s328, %s329
      %p340 = scmp.eq.s32.totalorder %s28, 0
      %p341 = por %p339, %p340
      %p342 = scmp.ne.s32.totalorder %s328, %s329
      %p343 = scmp.eq.s32.totalorder %s29, 1
      %p344 = por %p342, %p343
      %p346 = scmp.ne.s32.totalorder %s329, %s345
      %p347 = scmp.eq.s32.totalorder %s29, 0
      %p348 = por %p346, %p347
      %p349 = scmp.le.s32.totalorder 1, %s23
      %p350 = scmp.lt.s32.totalorder %s23, 3
      %p351 = pnand %p349, %p350
      %p352 = pneg %p351
      // Predicated region
      $region9: #{tpu_custom_call.1} parent=5 // pred_check
        _
      $region10: #{tpu_custom_call.1} parent=5 // pred_check_branch
        %354 = sbr.rel (%p351) target = $region12
      $region11: #{tpu_custom_call.1} parent=5 // pred_region
        %s355 = ssub.s32 %s23, 1
        // Predicated region
        $region13: #{tpu_custom_call.1} parent=11 // pred_check
          %p356 = pneg %p82
        $region14: #{tpu_custom_call.1} parent=11 // pred_check_branch
          %358 = sbr.rel (%p356) target = $region16
        $region15: #{tpu_custom_call.1} parent=11 // pred_region
          _
        $region16: #{tpu_custom_call.1} parent=11 // pred_fallthru
          _
        // Predicated region
        $region17: #{tpu_custom_call.1} parent=11 // pred_check
          %p359 = pneg %p103
        $region18: #{tpu_custom_call.1} parent=11 // pred_check_branch
          %361 = sbr.rel (%p359) target = $region20
        $region19: #{tpu_custom_call.1} parent=11 // pred_region
          _
        $region20: #{tpu_custom_call.1} parent=11 // pred_fallthru
          _
        // Predicated region
        $region21: #{tpu_custom_call.1} parent=11 // pred_check
          %p362 = pneg %p124
        $region22: #{tpu_custom_call.1} parent=11 // pred_check_branch
          %364 = sbr.rel (%p362) target = $region24
        $region23: #{tpu_custom_call.1} parent=11 // pred_region
          _
        $region24: #{tpu_custom_call.1} parent=11 // pred_fallthru
          _
        // Predicated region
        $region25: #{tpu_custom_call.1} parent=11 // pred_check
          %p365 = pneg %p145
        $region26: #{tpu_custom_call.1} parent=11 // pred_check_branch
          %367 = sbr.rel (%p365) target = $region28
        $region27: #{tpu_custom_call.1} parent=11 // pred_region
          _
        $region28: #{tpu_custom_call.1} parent=11 // pred_fallthru
          _
        // Predicated region
        $region29: #{tpu_custom_call.1} parent=11 // pred_check
          %p368 = pneg %p166
        $region30: #{tpu_custom_call.1} parent=11 // pred_check_branch
          %370 = sbr.rel (%p368) target = $region32
        $region31: #{tpu_custom_call.1} parent=11 // pred_region
          _
        $region32: #{tpu_custom_call.1} parent=11 // pred_fallthru
          _
        // Predicated region
        $region33: #{tpu_custom_call.1} parent=11 // pred_check
          %p371 = pneg %p187
        $region34: #{tpu_custom_call.1} parent=11 // pred_check_branch
          %373 = sbr.rel (%p371) target = $region36
        $region35: #{tpu_custom_call.1} parent=11 // pred_region
          _
        $region36: #{tpu_custom_call.1} parent=11 // pred_fallthru
          _
        // Predicated region
        $region37: #{tpu_custom_call.1} parent=11 // pred_check
          %p374 = pneg %p208
        $region38: #{tpu_custom_call.1} parent=11 // pred_check_branch
          %376 = sbr.rel (%p374) target = $region40
        $region39: #{tpu_custom_call.1} parent=11 // pred_region
          %s378 = ssub.s32 256, 256
          %379 = vsyncadd [#allocation6], %s378
          %s380 = sshll.u32 [#allocation5], 4
          %s381 = int_to_ptr.vmem [resolvable:$true] %s380
          %386 = dma.hbm_to_vmem [thread:$0]  %s7, 256, %s381, [#allocation6], 64, 64, 4
        $region40: #{tpu_custom_call.1} parent=11 // pred_fallthru
          _
        // Predicated region
        $region41: #{tpu_custom_call.1} parent=11 // pred_check
          %p387 = pneg %p229
        $region42: #{tpu_custom_call.1} parent=11 // pred_check_branch
          %389 = sbr.rel (%p387) target = $region44
        $region43: #{tpu_custom_call.1} parent=11 // pred_region
          _
        $region44: #{tpu_custom_call.1} parent=11 // pred_fallthru
          _
        // Predicated region
        $region45: #{tpu_custom_call.1} parent=11 // pred_check
          %p390 = pneg %p250
        $region46: #{tpu_custom_call.1} parent=11 // pred_check_branch
          %392 = sbr.rel (%p390) target = $region48
        $region47: #{tpu_custom_call.1} parent=11 // pred_region
          _
        $region48: #{tpu_custom_call.1} parent=11 // pred_fallthru
          _
        // Predicated region
        $region49: #{tpu_custom_call.1} parent=11 // pred_check
          %p393 = pneg %p271
        $region50: #{tpu_custom_call.1} parent=11 // pred_check_branch
          %395 = sbr.rel (%p393) target = $region52
        $region51: #{tpu_custom_call.1} parent=11 // pred_region
          _
        $region52: #{tpu_custom_call.1} parent=11 // pred_fallthru
          _
        // Predicated region
        $region53: #{tpu_custom_call.1} parent=11 // pred_check
          %p396 = pneg %p292
        $region54: #{tpu_custom_call.1} parent=11 // pred_check_branch
          %398 = sbr.rel (%p396) target = $region56
        $region55: #{tpu_custom_call.1} parent=11 // pred_region
          _
        $region56: #{tpu_custom_call.1} parent=11 // pred_fallthru
          _
        // Predicated region
        $region57: #{tpu_custom_call.1} parent=11 // pred_check
          %p399 = pneg %p313
        $region58: #{tpu_custom_call.1} parent=11 // pred_check_branch
          %401 = sbr.rel (%p399) target = $region60
        $region59: #{tpu_custom_call.1} parent=11 // pred_region
          _
        $region60: #{tpu_custom_call.1} parent=11 // pred_fallthru
          _
      $region12: #{tpu_custom_call.1} parent=5 // pred_fallthru
        _
      %p402 = scmp.lt.s32.totalorder %s23, 2
      // Predicated region
      $region61: #{tpu_custom_call.1} parent=5 // pred_check
        %p403 = pneg %p402
      $region62: #{tpu_custom_call.1} parent=5 // pred_check_branch
        %405 = sbr.rel (%p403) target = $region64
      $region63: #{tpu_custom_call.1} parent=5 // pred_region
        // Predicated region
        $region65: #{tpu_custom_call.1} parent=63 // pred_check
          %p406 = pneg %p55
        $region66: #{tpu_custom_call.1} parent=63 // pred_check_branch
          %408 = sbr.rel (%p406) target = $region68
        $region67: #{tpu_custom_call.1} parent=63 // pred_region
          %p409 = scmp.lt.s32.totalorder %s30, 1
          %s410 = scalar_select %p409, %s30, 1
          %s411 = smul.addr %s410, 8
          %s412 = scalar_lea.vmem %s0, %s411
        $region68: #{tpu_custom_call.1} parent=63 // pred_fallthru
          _
      $region64: #{tpu_custom_call.1} parent=5 // pred_fallthru
        _
      %p413 = scmp.le.s32.totalorder 1, %s23
      %p414 = scmp.lt.s32.totalorder %s23, 3
      %p415 = pnand %p413, %p414
      %p416 = pneg %p415
      // Predicated region
      $region69: #{tpu_custom_call.1} parent=5 // pred_check
        _
      $region70: #{tpu_custom_call.1} parent=5 // pred_check_branch
        %418 = sbr.rel (%p415) target = $region72
      $region71: #{tpu_custom_call.1} parent=5 // pred_region
        %s419 = ssub.s32 %s23, 1
        // Predicated region
        $region73: #{tpu_custom_call.1} parent=71 // pred_check
          %p420 = pneg %p208
        $region74: #{tpu_custom_call.1} parent=71 // pred_check_branch
          %422 = sbr.rel (%p420) target = $region76
        $region75: #{tpu_custom_call.1} parent=71 // pred_region
          %423 = dma.done [#allocation6], 256
        $region76: #{tpu_custom_call.1} parent=71 // pred_fallthru
          _
        %p424 = scmp.lt.s32.totalorder %s32, 1
        %s425 = scalar_select %p424, %s32, 1
        %s426 = smul.addr %s425, 8
        %s427 = scalar_lea.vmem %s0, %s426
        %p428 = pneg %p61
        %p429 = pneg %p58
        %p430 = pneg %p82
        %p431 = pneg %p79
        %p432 = pneg %p103
        %p433 = pneg %p100
        %p434 = pneg %p124
        %p435 = pneg %p121
        %p436 = pneg %p145
        %p437 = pneg %p142
        %p438 = pneg %p166
        %p439 = pneg %p163
        %p440 = pneg %p187
        %p441 = pneg %p184
        %p442 = pneg %p208
        %p443 = pneg %p205
        %p444 = pneg %p229
        %p445 = pneg %p226
        %p446 = pneg %p250
        %p447 = pneg %p247
        %p448 = pneg %p271
        %p449 = pneg %p268
        %p450 = pneg %p292
        %p451 = pneg %p289
        %p452 = pneg %p313
        %p453 = pneg %p310
        %p454 = pneg %p341
        %p455 = pneg %p338
        %s456 = sand.u32 %s328, 1
        %s457 = scalar_lea.sflag [#allocation7], %s456
        %s458 = sand.u32 %s328, 1
        %s459 = smul.addr %s458, 8
        %s460 = scalar_lea.vmem [#allocation8], %s459
        %p461 = scmp.lt.s32.totalorder %s32, 1
        %s462 = scalar_select %p461, %s32, 1
        %s463 = smul.addr %s462, 8
        %s464 = scalar_lea.vmem %s0, %s463
        %p466 = scmp.eq.s32.totalorder %s33, 0
        // Predicated region
        $region77: #{tpu_custom_call.1} parent=71 // pred_check
          %p467 = pneg %p466
        $region78: #{tpu_custom_call.1} parent=71 // pred_check_branch
          %469 = sbr.rel (%p467) target = $region80
        $region79: #{tpu_custom_call.1} parent=71 // pred_region
          %v470 = vld [vmem:[%s464] sm:$0xff]
          %v471 = vpack.c.bf16 %v470, %v470
          %v472 = vld [vmem:[%s1] sm:$0xf]
          %v473 = vld [vmem:[%s1 + $0x4] sm:$0xf]
          %v474 = vld [vmem:[%s1 + $0x8] sm:$0xf]
          %v475 = vld [vmem:[%s1 + $0xc] sm:$0xf]
          %v476 = vld [vmem:[%s2] sm:$0x1]
          %v478 = vlaneseq
          %v479 = vshrl.u32 %v478, 7
          %v480 = vsub.s32 0, %v479
          %v481 = vrot.slane %v476, %v480
          %v487 = vunpack.c.l.b16 %v472
          %v488 = vunpack.c.l.b16 %v473
          %v489 = vunpack.c.l.b16 %v474
          %v490 = vunpack.c.l.b16 %v475
          %v491 = vpack.c.b16 %v488, %v487
          %v492 = vpack.c.b16 %v490, %v489
          %vm495 = vcmask 261120
          %v497 = vsel %vm495, %v471, 0
          %499 = vmatprep.subr.bf16.mxu0 0
          %500 = vmatpush1.bf16.msra.mxu0 %v491
          %501 = vmatprep.subr.bf16.mxu0 0
          %502 = vmatpush1.bf16.msra.mxu0 %v492
          %503 = vmatprep.subr.bf16.mxu0 0
          %504 = vmatpush1.bf16.msra.mxu0 0
          %505 = vmatprep.subr.bf16.mxu0 0
          %506 = vmatpush1.bf16.msra.mxu0 0
          %507 = vmatprep.subr.bf16.mxu0 0
          %508 = vmatpush1.bf16.msra.mxu0 0
          %509 = vmatprep.subr.bf16.mxu0 0
          %510 = vmatpush1.bf16.msra.mxu0 0
          %511 = vmatprep.subr.bf16.mxu0 0
          %512 = vmatpush1.bf16.msra.mxu0 0
          %513 = vmatprep.subr.bf16.mxu0 0
          %514 = vmatpush1.bf16.msra.mxu0 0
          %515 = vmatprep.subr.bf16.mxu0 0
          %516 = vmatpush1.bf16.msra.mxu0 0
          %517 = vmatprep.subr.bf16.mxu0 0
          %518 = vmatpush1.bf16.msra.mxu0 0
          %519 = vmatprep.subr.bf16.mxu0 0
          %520 = vmatpush1.bf16.msra.mxu0 0
          %521 = vmatprep.subr.bf16.mxu0 0
          %522 = vmatpush1.bf16.msra.mxu0 0
          %523 = vmatprep.subr.bf16.mxu0 0
          %524 = vmatpush1.bf16.msra.mxu0 0
          %525 = vmatprep.subr.bf16.mxu0 0
          %526 = vmatpush1.bf16.msra.mxu0 0
          %527 = vmatprep.subr.bf16.mxu0 0
          %528 = vmatpush1.bf16.msra.mxu0 0
          %529 = vmatprep.subr.bf16.mxu0 0
          %530 = vmatpush1.bf16.msra.mxu0 0
          %531 = vmatprep.mubr.bf16.mxu0 0
          %532 = vmatmul.mubr.bf16.gmra.mrb[0].mxu0 %v497
          %v533 = vpop.f32.mrb[0].mxu0
          %v534 = vadd.f32 %v481, %v533
          %v535 = vpop.f32.mrb[0].mxu0
          %v536 = vpop.f32.mrb[0].mxu0
          %v537 = vpop.f32.mrb[0].mxu0
          %538 = vdwg.mxu0
          %v539 = vpack.c.bf16 %v534, %v534
          %vm540 = vcmask 257024
          %541 = vst.msk [vmem:[#allocation2] sm:$0xf] %vm540, %v539
          %v543 = vunpack.c.l.b16 %v539
          %v544 = vpack.c.b16 %v543, %v543
          %545 = vrot.lane.b32.xlu0 %v544, 96
          %v546 = vpop.permute.xlu0 %545
          %548 = vst.msk [vmem:[#allocation3] sm:$0xf] %vm540, %v546
          %549 = vrot.lane.b32.xlu0 %v544, 64
          %v550 = vpop.permute.xlu0 %549
          %552 = vst.msk [vmem:[#allocation4] sm:$0xf] %vm540, %v550
        $region80: #{tpu_custom_call.1} parent=71 // pred_fallthru
          _
        %s553 = smul.u32 %s33, 8
        %s554 = sshra.s32 %s553, 3
        %s555 = sand.u32 %s553, 7
        %s556 = smul.addr %s554, 4
        %s557 = scalar_lea.vmem [#allocation2], %s556
        %v558 = vld [vmem:[%s557] sm:$0xf]
        %v559 = vld [vmem:[%s3] sm:$0xf]
        %v560 = vld [vmem:[%s3 + $0x4] sm:$0xf]
        %v561 = vld [vmem:[%s3 + $0x8] sm:$0xf]
        %v562 = vld [vmem:[%s3 + $0xc] sm:$0xf]
        %v563 = vld [vmem:[#allocation3] sm:$0xf]
        %v564 = vld [vmem:[#allocation4] sm:$0xf]
        %vm565 = vcmask 64512
        %v567 = vsel %vm565, %v558, 0
        %v570 = vsel %vm565, %v563, 0
        %572 = vmatprep.subr.bf16.mxu0 0
        %573 = vmatpush1.bf16.xpose.msra.mxu0 %v570
        %574 = vmatprep.subr.bf16.mxu0 0
        %575 = vmatpush1.bf16.xpose.msra.mxu0 0
        %576 = vmatprep.subr.bf16.mxu0 0
        %577 = vmatpush1.bf16.xpose.msra.mxu0 0
        %578 = vmatprep.subr.bf16.mxu0 0
        %579 = vmatpush1.bf16.xpose.msra.mxu0 0
        %580 = vmatprep.subr.bf16.mxu0 0
        %581 = vmatpush1.bf16.xpose.msra.mxu0 0
        %582 = vmatprep.subr.bf16.mxu0 0
        %583 = vmatpush1.bf16.xpose.msra.mxu0 0
        %584 = vmatprep.subr.bf16.mxu0 0
        %585 = vmatpush1.bf16.xpose.msra.mxu0 0
        %586 = vmatprep.subr.bf16.mxu0 0
        %587 = vmatpush1.bf16.xpose.msra.mxu0 0
        %588 = vmatprep.subr.bf16.mxu0 0
        %589 = vmatpush1.bf16.xpose.msra.mxu0 0
        %590 = vmatprep.subr.bf16.mxu0 0
        %591 = vmatpush1.bf16.xpose.msra.mxu0 0
        %592 = vmatprep.subr.bf16.mxu0 0
        %593 = vmatpush1.bf16.xpose.msra.mxu0 0
        %594 = vmatprep.subr.bf16.mxu0 0
        %595 = vmatpush1.bf16.xpose.msra.mxu0 0
        %596 = vmatprep.subr.bf16.mxu0 0
        %597 = vmatpush1.bf16.xpose.msra.mxu0 0
        %598 = vmatprep.subr.bf16.mxu0 0
        %599 = vmatpush1.bf16.xpose.msra.mxu0 0
        %600 = vmatprep.subr.bf16.mxu0 0
        %601 = vmatpush1.bf16.xpose.msra.mxu0 0
        %602 = vmatprep.subr.bf16.mxu0 0
        %603 = vmatpush1.bf16.xpose.msra.mxu0 0
        %604 = vmatprep.mubr.bf16.mxu0 0
        %605 = vmatmul.mubr.bf16.gmra.mrb[0].mxu0 %v567
        %v606 = vpop.f32.mrb[0].mxu0
        %v607 = vadd.f32 0.0, %v606
        %v608 = vpop.f32.mrb[0].mxu0
        %v609 = vpop.f32.mrb[0].mxu0
        %v610 = vpop.f32.mrb[0].mxu0
        %611 = vdwg.mxu0
        %v612 = vsel %vm565, %v607, -inf
        %613 = vmax.xlane.f32.xlu0 %v612
        %v614 = vpop.xlane.xlu0 %613
        %v615 = vsub.f32 %v607, %v614
        %v616 = vmul.f32 %v615, 1.442695
        %v617 = vpow.pop %v616
        %v618 = vsel %vm565, %v617, 0.0
        %619 = vadd.xlane.f32.xlu0 %v618
        %v620 = vpop.xlane.xlu0 %619
        %v621 = vrcp.pop %v620
        %v622 = vmul.f32 %v617, %v621
        %v623 = vpack.c.bf16 %v622, %v622
        %v625 = vsel %vm565, %v623, 0
        %vm627 = vcmask 1043456
        %v629 = vsel %vm627, %v564, 0
        %631 = vmatprep.subr.bf16.mxu0 0
        %632 = vmatpush1.bf16.msra.mxu0 %v629
        %633 = vmatprep.subr.bf16.mxu0 0
        %634 = vmatpush1.bf16.msra.mxu0 0
        %635 = vmatprep.subr.bf16.mxu0 0
        %636 = vmatpush1.bf16.msra.mxu0 0
        %637 = vmatprep.subr.bf16.mxu0 0
        %638 = vmatpush1.bf16.msra.mxu0 0
        %639 = vmatprep.subr.bf16.mxu0 0
        %640 = vmatpush1.bf16.msra.mxu0 0
        %641 = vmatprep.subr.bf16.mxu0 0
        %642 = vmatpush1.bf16.msra.mxu0 0
        %643 = vmatprep.subr.bf16.mxu0 0
        %644 = vmatpush1.bf16.msra.mxu0 0
        %645 = vmatprep.subr.bf16.mxu0 0
        %646 = vmatpush1.bf16.msra.mxu0 0
        %647 = vmatprep.subr.bf16.mxu0 0
        %648 = vmatpush1.bf16.msra.mxu0 0
        %649 = vmatprep.subr.bf16.mxu0 0
        %650 = vmatpush1.bf16.msra.mxu0 0
        %651 = vmatprep.subr.bf16.mxu0 0
        %652 = vmatpush1.bf16.msra.mxu0 0
        %653 = vmatprep.subr.bf16.mxu0 0
        %654 = vmatpush1.bf16.msra.mxu0 0
        %655 = vmatprep.subr.bf16.mxu0 0
        %656 = vmatpush1.bf16.msra.mxu0 0
        %657 = vmatprep.subr.bf16.mxu0 0
        %658 = vmatpush1.bf16.msra.mxu0 0
        %659 = vmatprep.subr.bf16.mxu0 0
        %660 = vmatpush1.bf16.msra.mxu0 0
        %661 = vmatprep.subr.bf16.mxu0 0
        %662 = vmatpush1.bf16.msra.mxu0 0
        %663 = vmatprep.mubr.bf16.mxu0 0
        %664 = vmatmul.mubr.bf16.gmra.mrb[0].mxu0 %v625
        %v665 = vpop.f32.mrb[0].mxu0
        %v666 = vadd.f32 0.0, %v665
        %v667 = vpop.f32.mrb[0].mxu0
        %v668 = vpop.f32.mrb[0].mxu0
        %v669 = vpop.f32.mrb[0].mxu0
        %670 = vdwg.mxu0
        %v671 = vpack.c.bf16 %v666, %v666
        %v673 = vunpack.c.l.b16 %v558
        %v674 = vpack.c.b16 %v673, %v673
        %675 = vrot.lane.b32.xlu0 %v674, 120
        %v676 = vpop.permute.xlu0 %675
        %v678 = vunpack.c.l.b16 %v563
        %v679 = vpack.c.b16 %v678, %v678
        %680 = vrot.lane.b32.xlu0 %v679, 120
        %v681 = vpop.permute.xlu0 %680
        %v683 = vsel %vm565, %v676, 0
        %v686 = vsel %vm565, %v681, 0
        %688 = vmatprep.subr.bf16.mxu0 0
        %689 = vmatpush1.bf16.xpose.msra.mxu0 %v686
        %690 = vmatprep.subr.bf16.mxu0 0
        %691 = vmatpush1.bf16.xpose.msra.mxu0 0
        %692 = vmatprep.subr.bf16.mxu0 0
        %693 = vmatpush1.bf16.xpose.msra.mxu0 0
        %694 = vmatprep.subr.bf16.mxu0 0
        %695 = vmatpush1.bf16.xpose.msra.mxu0 0
        %696 = vmatprep.subr.bf16.mxu0 0
        %697 = vmatpush1.bf16.xpose.msra.mxu0 0
        %698 = vmatprep.subr.bf16.mxu0 0
        %699 = vmatpush1.bf16.xpose.msra.mxu0 0
        %700 = vmatprep.subr.bf16.mxu0 0
        %701 = vmatpush1.bf16.xpose.msra.mxu0 0
        %702 = vmatprep.subr.bf16.mxu0 0
        %703 = vmatpush1.bf16.xpose.msra.mxu0 0
        %704 = vmatprep.subr.bf16.mxu0 0
        %705 = vmatpush1.bf16.xpose.msra.mxu0 0
        %706 = vmatprep.subr.bf16.mxu0 0
        %707 = vmatpush1.bf16.xpose.msra.mxu0 0
        %708 = vmatprep.subr.bf16.mxu0 0
        %709 = vmatpush1.bf16.xpose.msra.mxu0 0
        %710 = vmatprep.subr.bf16.mxu0 0
        %711 = vmatpush1.bf16.xpose.msra.mxu0 0
        %712 = vmatprep.subr.bf16.mxu0 0
        %713 = vmatpush1.bf16.xpose.msra.mxu0 0
        %714 = vmatprep.subr.bf16.mxu0 0
        %715 = vmatpush1.bf16.xpose.msra.mxu0 0
        %716 = vmatprep.subr.bf16.mxu0 0
        %717 = vmatpush1.bf16.xpose.msra.mxu0 0
        %718 = vmatprep.subr.bf16.mxu0 0
        %719 = vmatpush1.bf16.xpose.msra.mxu0 0
        %720 = vmatprep.mubr.bf16.mxu0 0
        %721 = vmatmul.mubr.bf16.gmra.mrb[0].mxu0 %v683
        %v722 = vpop.f32.mrb[0].mxu0
        %v723 = vadd.f32 0.0, %v722
        %v724 = vpop.f32.mrb[0].mxu0
        %v725 = vpop.f32.mrb[0].mxu0
        %v726 = vpop.f32.mrb[0].mxu0
        %727 = vdwg.mxu0
        %v728 = vsel %vm565, %v723, -inf
        %729 = vmax.xlane.f32.xlu0 %v728
        %v730 = vpop.xlane.xlu0 %729
        %v731 = vsub.f32 %v723, %v730
        %v732 = vmul.f32 %v731, 1.442695
        %v733 = vpow.pop %v732
        %v734 = vsel %vm565, %v733, 0.0
        %735 = vadd.xlane.f32.xlu0 %v734
        %v736 = vpop.xlane.xlu0 %735
        %v737 = vrcp.pop %v736
        %v738 = vmul.f32 %v733, %v737
        %v739 = vpack.c.bf16 %v738, %v738
        %v741 = vunpack.c.l.b16 %v564
        %v742 = vpack.c.b16 %v741, %v741
        %743 = vrot.lane.b32.xlu0 %v742, 120
        %v744 = vpop.permute.xlu0 %743
        %v746 = vsel %vm565, %v739, 0
        %v749 = vsel %vm627, %v744, 0
        %751 = vmatprep.subr.bf16.mxu0 0
        %752 = vmatpush1.bf16.msra.mxu0 %v749
        %753 = vmatprep.subr.bf16.mxu0 0
        %754 = vmatpush1.bf16.msra.mxu0 0
        %755 = vmatprep.subr.bf16.mxu0 0
        %756 = vmatpush1.bf16.msra.mxu0 0
        %757 = vmatprep.subr.bf16.mxu0 0
        %758 = vmatpush1.bf16.msra.mxu0 0
        %759 = vmatprep.subr.bf16.mxu0 0
        %760 = vmatpush1.bf16.msra.mxu0 0
        %761 = vmatprep.subr.bf16.mxu0 0
        %762 = vmatpush1.bf16.msra.mxu0 0
        %763 = vmatprep.subr.bf16.mxu0 0
        %764 = vmatpush1.bf16.msra.mxu0 0
        %765 = vmatprep.subr.bf16.mxu0 0
        %766 = vmatpush1.bf16.msra.mxu0 0
        %767 = vmatprep.subr.bf16.mxu0 0
        %768 = vmatpush1.bf16.msra.mxu0 0
        %769 = vmatprep.subr.bf16.mxu0 0
        %770 = vmatpush1.bf16.msra.mxu0 0
        %771 = vmatprep.subr.bf16.mxu0 0
        %772 = vmatpush1.bf16.msra.mxu0 0
        %773 = vmatprep.subr.bf16.mxu0 0
        %774 = vmatpush1.bf16.msra.mxu0 0
        %775 = vmatprep.subr.bf16.mxu0 0
        %776 = vmatpush1.bf16.msra.mxu0 0
        %777 = vmatprep.subr.bf16.mxu0 0
        %778 = vmatpush1.bf16.msra.mxu0 0
        %779 = vmatprep.subr.bf16.mxu0 0
        %780 = vmatpush1.bf16.msra.mxu0 0
        %781 = vmatprep.subr.bf16.mxu0 0
        %782 = vmatpush1.bf16.msra.mxu0 0
        %783 = vmatprep.mubr.bf16.mxu0 0
        %784 = vmatmul.mubr.bf16.gmra.mrb[0].mxu0 %v746
        %v785 = vpop.f32.mrb[0].mxu0
        %v786 = vadd.f32 0.0, %v785
        %v787 = vpop.f32.mrb[0].mxu0
        %v788 = vpop.f32.mrb[0].mxu0
        %v789 = vpop.f32.mrb[0].mxu0
        %790 = vdwg.mxu0
        %v791 = vpack.c.bf16 %v786, %v786
        %v793 = vsel %vm565, %v791, 0
        %v796 = vsel %vm627, %v560, 0
        %798 = vmatprep.subr.bf16.mxu0 0
        %799 = vmatpush1.bf16.msra.mxu0 %v796
        %800 = vmatprep.subr.bf16.mxu0 0
        %801 = vmatpush1.bf16.msra.mxu0 0
        %802 = vmatprep.subr.bf16.mxu0 0
        %803 = vmatpush1.bf16.msra.mxu0 0
        %804 = vmatprep.subr.bf16.mxu0 0
        %805 = vmatpush1.bf16.msra.mxu0 0
        %806 = vmatprep.subr.bf16.mxu0 0
        %807 = vmatpush1.bf16.msra.mxu0 0
        %808 = vmatprep.subr.bf16.mxu0 0
        %809 = vmatpush1.bf16.msra.mxu0 0
        %810 = vmatprep.subr.bf16.mxu0 0
        %811 = vmatpush1.bf16.msra.mxu0 0
        %812 = vmatprep.subr.bf16.mxu0 0
        %813 = vmatpush1.bf16.msra.mxu0 0
        %814 = vmatprep.subr.bf16.mxu0 0
        %815 = vmatpush1.bf16.msra.mxu0 0
        %816 = vmatprep.subr.bf16.mxu0 0
        %817 = vmatpush1.bf16.msra.mxu0 0
        %818 = vmatprep.subr.bf16.mxu0 0
        %819 = vmatpush1.bf16.msra.mxu0 0
        %820 = vmatprep.subr.bf16.mxu0 0
        %821 = vmatpush1.bf16.msra.mxu0 0
        %822 = vmatprep.subr.bf16.mxu0 0
        %823 = vmatpush1.bf16.msra.mxu0 0
        %824 = vmatprep.subr.bf16.mxu0 0
        %825 = vmatpush1.bf16.msra.mxu0 0
        %826 = vmatprep.subr.bf16.mxu0 0
        %827 = vmatpush1.bf16.msra.mxu0 0
        %828 = vmatprep.subr.bf16.mxu0 0
        %829 = vmatpush1.bf16.msra.mxu0 0
        %830 = vmatprep.mubr.bf16.mxu0 0
        %831 = vmatmul.mubr.bf16.gmra.mrb[0].mxu0 %v793
        %v832 = vpop.f32.mrb[0].mxu0
        %v833 = vadd.f32 0.0, %v832
        %v834 = vpop.f32.mrb[0].mxu0
        %v835 = vpop.f32.mrb[0].mxu0
        %v836 = vpop.f32.mrb[0].mxu0
        %837 = vdwg.mxu0
        %v839 = vsel %vm565, %v671, 0
        %v842 = vsel %vm627, %v559, 0
        %844 = vmatprep.subr.bf16.mxu0 0
        %845 = vmatpush1.bf16.msra.mxu0 %v842
        %846 = vmatprep.subr.bf16.mxu0 0
        %847 = vmatpush1.bf16.msra.mxu0 0
        %848 = vmatprep.subr.bf16.mxu0 0
        %849 = vmatpush1.bf16.msra.mxu0 0
        %850 = vmatprep.subr.bf16.mxu0 0
        %851 = vmatpush1.bf16.msra.mxu0 0
        %852 = vmatprep.subr.bf16.mxu0 0
        %853 = vmatpush1.bf16.msra.mxu0 0
        %854 = vmatprep.subr.bf16.mxu0 0
        %855 = vmatpush1.bf16.msra.mxu0 0
        %856 = vmatprep.subr.bf16.mxu0 0
        %857 = vmatpush1.bf16.msra.mxu0 0
        %858 = vmatprep.subr.bf16.mxu0 0
        %859 = vmatpush1.bf16.msra.mxu0 0
        %860 = vmatprep.subr.bf16.mxu0 0
        %861 = vmatpush1.bf16.msra.mxu0 0
        %862 = vmatprep.subr.bf16.mxu0 0
        %863 = vmatpush1.bf16.msra.mxu0 0
        %864 = vmatprep.subr.bf16.mxu0 0
        %865 = vmatpush1.bf16.msra.mxu0 0
        %866 = vmatprep.subr.bf16.mxu0 0
        %867 = vmatpush1.bf16.msra.mxu0 0
        %868 = vmatprep.subr.bf16.mxu0 0
        %869 = vmatpush1.bf16.msra.mxu0 0
        %870 = vmatprep.subr.bf16.mxu0 0
        %871 = vmatpush1.bf16.msra.mxu0 0
        %872 = vmatprep.subr.bf16.mxu0 0
        %873 = vmatpush1.bf16.msra.mxu0 0
        %874 = vmatprep.subr.bf16.mxu0 0
        %875 = vmatpush1.bf16.msra.mxu0 0
        %876 = vmatprep.mubr.bf16.mxu0 0
        %877 = vmatmul.mubr.bf16.gmra.mrb[0].mxu0 %v839
        %v878 = vpop.f32.mrb[0].mxu0
        %v879 = vadd.f32 %v833, %v878
        %v880 = vpop.f32.mrb[0].mxu0
        %v881 = vpop.f32.mrb[0].mxu0
        %v882 = vpop.f32.mrb[0].mxu0
        %883 = vdwg.mxu0
        %884 = vrot.lane.b32.xlu0 %v674, 112
        %v885 = vpop.permute.xlu0 %884
        %886 = vrot.lane.b32.xlu0 %v679, 112
        %v887 = vpop.permute.xlu0 %886
        %v889 = vsel %vm565, %v885, 0
        %v892 = vsel %vm565, %v887, 0
        %894 = vmatprep.subr.bf16.mxu0 0
        %895 = vmatpush1.bf16.xpose.msra.mxu0 %v892
        %896 = vmatprep.subr.bf16.mxu0 0
        %897 = vmatpush1.bf16.xpose.msra.mxu0 0
        %898 = vmatprep.subr.bf16.mxu0 0
        %899 = vmatpush1.bf16.xpose.msra.mxu0 0
        %900 = vmatprep.subr.bf16.mxu0 0
        %901 = vmatpush1.bf16.xpose.msra.mxu0 0
        %902 = vmatprep.subr.bf16.mxu0 0
        %903 = vmatpush1.bf16.xpose.msra.mxu0 0
        %904 = vmatprep.subr.bf16.mxu0 0
        %905 = vmatpush1.bf16.xpose.msra.mxu0 0
        %906 = vmatprep.subr.bf16.mxu0 0
        %907 = vmatpush1.bf16.xpose.msra.mxu0 0
        %908 = vmatprep.subr.bf16.mxu0 0
        %909 = vmatpush1.bf16.xpose.msra.mxu0 0
        %910 = vmatprep.subr.bf16.mxu0 0
        %911 = vmatpush1.bf16.xpose.msra.mxu0 0
        %912 = vmatprep.subr.bf16.mxu0 0
        %913 = vmatpush1.bf16.xpose.msra.mxu0 0
        %914 = vmatprep.subr.bf16.mxu0 0
        %915 = vmatpush1.bf16.xpose.msra.mxu0 0
        %916 = vmatprep.subr.bf16.mxu0 0
        %917 = vmatpush1.bf16.xpose.msra.mxu0 0
        %918 = vmatprep.subr.bf16.mxu0 0
        %919 = vmatpush1.bf16.xpose.msra.mxu0 0
        %920 = vmatprep.subr.bf16.mxu0 0
        %921 = vmatpush1.bf16.xpose.msra.mxu0 0
        %922 = vmatprep.subr.bf16.mxu0 0
        %923 = vmatpush1.bf16.xpose.msra.mxu0 0
        %924 = vmatprep.subr.bf16.mxu0 0
        %925 = vmatpush1.bf16.xpose.msra.mxu0 0
        %926 = vmatprep.mubr.bf16.mxu0 0
        %927 = vmatmul.mubr.bf16.gmra.mrb[0].mxu0 %v889
        %v928 = vpop.f32.mrb[0].mxu0
        %v929 = vadd.f32 0.0, %v928
        %v930 = vpop.f32.mrb[0].mxu0
        %v931 = vpop.f32.mrb[0].mxu0
        %v932 = vpop.f32.mrb[0].mxu0
        %933 = vdwg.mxu0
        %v934 = vsel %vm565, %v929, -inf
        %935 = vmax.xlane.f32.xlu0 %v934
        %v936 = vpop.xlane.xlu0 %935
        %v937 = vsub.f32 %v929, %v936
        %v938 = vmul.f32 %v937, 1.442695
        %v939 = vpow.pop %v938
        %v940 = vsel %vm565, %v939, 0.0
        %941 = vadd.xlane.f32.xlu0 %v940
        %v942 = vpop.xlane.xlu0 %941
        %v943 = vrcp.pop %v942
        %v944 = vmul.f32 %v939, %v943
        %v945 = vpack.c.bf16 %v944, %v944
        %946 = vrot.lane.b32.xlu0 %v742, 112
        %v947 = vpop.permute.xlu0 %946
        %v949 = vsel %vm565, %v945, 0
        %v952 = vsel %vm627, %v947, 0
        %954 = vmatprep.subr.bf16.mxu0 0
        %955 = vmatpush1.bf16.msra.mxu0 %v952
        %956 = vmatprep.subr.bf16.mxu0 0
        %957 = vmatpush1.bf16.msra.mxu0 0
        %958 = vmatprep.subr.bf16.mxu0 0
        %959 = vmatpush1.bf16.msra.mxu0 0
        %960 = vmatprep.subr.bf16.mxu0 0
        %961 = vmatpush1.bf16.msra.mxu0 0
        %962 = vmatprep.subr.bf16.mxu0 0
        %963 = vmatpush1.bf16.msra.mxu0 0
        %964 = vmatprep.subr.bf16.mxu0 0
        %965 = vmatpush1.bf16.msra.mxu0 0
        %966 = vmatprep.subr.bf16.mxu0 0
        %967 = vmatpush1.bf16.msra.mxu0 0
        %968 = vmatprep.subr.bf16.mxu0 0
        %969 = vmatpush1.bf16.msra.mxu0 0
        %970 = vmatprep.subr.bf16.mxu0 0
        %971 = vmatpush1.bf16.msra.mxu0 0
        %972 = vmatprep.subr.bf16.mxu0 0
        %973 = vmatpush1.bf16.msra.mxu0 0
        %974 = vmatprep.subr.bf16.mxu0 0
        %975 = vmatpush1.bf16.msra.mxu0 0
        %976 = vmatprep.subr.bf16.mxu0 0
        %977 = vmatpush1.bf16.msra.mxu0 0
        %978 = vmatprep.subr.bf16.mxu0 0
        %979 = vmatpush1.bf16.msra.mxu0 0
        %980 = vmatprep.subr.bf16.mxu0 0
        %981 = vmatpush1.bf16.msra.mxu0 0
        %982 = vmatprep.subr.bf16.mxu0 0
        %983 = vmatpush1.bf16.msra.mxu0 0
        %984 = vmatprep.subr.bf16.mxu0 0
        %985 = vmatpush1.bf16.msra.mxu0 0
        %986 = vmatprep.mubr.bf16.mxu0 0
        %987 = vmatmul.mubr.bf16.gmra.mrb[0].mxu0 %v949
        %v988 = vpop.f32.mrb[0].mxu0
        %v989 = vadd.f32 0.0, %v988
        %v990 = vpop.f32.mrb[0].mxu0
        %v991 = vpop.f32.mrb[0].mxu0
        %v992 = vpop.f32.mrb[0].mxu0
        %993 = vdwg.mxu0
        %v994 = vpack.c.bf16 %v989, %v989
        %v996 = vsel %vm565, %v994, 0
        %v999 = vsel %vm627, %v561, 0
        %1001 = vmatprep.subr.bf16.mxu0 0
        %1002 = vmatpush1.bf16.msra.mxu0 %v999
        %1003 = vmatprep.subr.bf16.mxu0 0
        %1004 = vmatpush1.bf16.msra.mxu0 0
        %1005 = vmatprep.subr.bf16.mxu0 0
        %1006 = vmatpush1.bf16.msra.mxu0 0
        %1007 = vmatprep.subr.bf16.mxu0 0
        %1008 = vmatpush1.bf16.msra.mxu0 0
        %1009 = vmatprep.subr.bf16.mxu0 0
        %1010 = vmatpush1.bf16.msra.mxu0 0
        %1011 = vmatprep.subr.bf16.mxu0 0
        %1012 = vmatpush1.bf16.msra.mxu0 0
        %1013 = vmatprep.subr.bf16.mxu0 0
        %1014 = vmatpush1.bf16.msra.mxu0 0
        %1015 = vmatprep.subr.bf16.mxu0 0
        %1016 = vmatpush1.bf16.msra.mxu0 0
        %1017 = vmatprep.subr.bf16.mxu0 0
        %1018 = vmatpush1.bf16.msra.mxu0 0
        %1019 = vmatprep.subr.bf16.mxu0 0
        %1020 = vmatpush1.bf16.msra.mxu0 0
        %1021 = vmatprep.subr.bf16.mxu0 0
        %1022 = vmatpush1.bf16.msra.mxu0 0
        %1023 = vmatprep.subr.bf16.mxu0 0
        %1024 = vmatpush1.bf16.msra.mxu0 0
        %1025 = vmatprep.subr.bf16.mxu0 0
        %1026 = vmatpush1.bf16.msra.mxu0 0
        %1027 = vmatprep.subr.bf16.mxu0 0
        %1028 = vmatpush1.bf16.msra.mxu0 0
        %1029 = vmatprep.subr.bf16.mxu0 0
        %1030 = vmatpush1.bf16.msra.mxu0 0
        %1031 = vmatprep.subr.bf16.mxu0 0
        %1032 = vmatpush1.bf16.msra.mxu0 0
        %1033 = vmatprep.mubr.bf16.mxu0 0
        %1034 = vmatmul.mubr.bf16.gmra.mrb[0].mxu0 %v996
        %v1035 = vpop.f32.mrb[0].mxu0
        %v1036 = vadd.f32 0.0, %v1035
        %v1037 = vpop.f32.mrb[0].mxu0
        %v1038 = vpop.f32.mrb[0].mxu0
        %v1039 = vpop.f32.mrb[0].mxu0
        %1040 = vdwg.mxu0
        %v1041 = vadd.f32 %v879, %v1036
        %1042 = vrot.lane.b32.xlu0 %v674, 104
        %v1043 = vpop.permute.xlu0 %1042
        %1044 = vrot.lane.b32.xlu0 %v679, 104
        %v1045 = vpop.permute.xlu0 %1044
        %v1047 = vsel %vm565, %v1043, 0
        %v1050 = vsel %vm565, %v1045, 0
        %1052 = vmatprep.subr.bf16.mxu0 0
        %1053 = vmatpush1.bf16.xpose.msra.mxu0 %v1050
        %1054 = vmatprep.subr.bf16.mxu0 0
        %1055 = vmatpush1.bf16.xpose.msra.mxu0 0
        %1056 = vmatprep.subr.bf16.mxu0 0
        %1057 = vmatpush1.bf16.xpose.msra.mxu0 0
        %1058 = vmatprep.subr.bf16.mxu0 0
        %1059 = vmatpush1.bf16.xpose.msra.mxu0 0
        %1060 = vmatprep.subr.bf16.mxu0 0
        %1061 = vmatpush1.bf16.xpose.msra.mxu0 0
        %1062 = vmatprep.subr.bf16.mxu0 0
        %1063 = vmatpush1.bf16.xpose.msra.mxu0 0
        %1064 = vmatprep.subr.bf16.mxu0 0
        %1065 = vmatpush1.bf16.xpose.msra.mxu0 0
        %1066 = vmatprep.subr.bf16.mxu0 0
        %1067 = vmatpush1.bf16.xpose.msra.mxu0 0
        %1068 = vmatprep.subr.bf16.mxu0 0
        %1069 = vmatpush1.bf16.xpose.msra.mxu0 0
        %1070 = vmatprep.subr.bf16.mxu0 0
        %1071 = vmatpush1.bf16.xpose.msra.mxu0 0
        %1072 = vmatprep.subr.bf16.mxu0 0
        %1073 = vmatpush1.bf16.xpose.msra.mxu0 0
        %1074 = vmatprep.subr.bf16.mxu0 0
        %1075 = vmatpush1.bf16.xpose.msra.mxu0 0
        %1076 = vmatprep.subr.bf16.mxu0 0
        %1077 = vmatpush1.bf16.xpose.msra.mxu0 0
        %1078 = vmatprep.subr.bf16.mxu0 0
        %1079 = vmatpush1.bf16.xpose.msra.mxu0 0
        %1080 = vmatprep.subr.bf16.mxu0 0
        %1081 = vmatpush1.bf16.xpose.msra.mxu0 0
        %1082 = vmatprep.subr.bf16.mxu0 0
        %1083 = vmatpush1.bf16.xpose.msra.mxu0 0
        %1084 = vmatprep.mubr.bf16.mxu0 0
        %1085 = vmatmul.mubr.bf16.gmra.mrb[0].mxu0 %v1047
        %v1086 = vpop.f32.mrb[0].mxu0
        %v1087 = vadd.f32 0.0, %v1086
        %v1088 = vpop.f32.mrb[0].mxu0
        %v1089 = vpop.f32.mrb[0].mxu0
        %v1090 = vpop.f32.mrb[0].mxu0
        %1091 = vdwg.mxu0
        %v1092 = vsel %vm565, %v1087, -inf
        %1093 = vmax.xlane.f32.xlu0 %v1092
        %v1094 = vpop.xlane.xlu0 %1093
        %v1095 = vsub.f32 %v1087, %v1094
        %v1096 = vmul.f32 %v1095, 1.442695
        %v1097 = vpow.pop %v1096
        %v1098 = vsel %vm565, %v1097, 0.0
        %1099 = vadd.xlane.f32.xlu0 %v1098
        %v1100 = vpop.xlane.xlu0 %1099
        %v1101 = vrcp.pop %v1100
        %v1102 = vmul.f32 %v1097, %v1101
        %v1103 = vpack.c.bf16 %v1102, %v1102
        %1104 = vrot.lane.b32.xlu0 %v742, 104
        %v1105 = vpop.permute.xlu0 %1104
        %v1107 = vsel %vm565, %v1103, 0
        %v1110 = vsel %vm627, %v1105, 0
        %1112 = vmatprep.subr.bf16.mxu0 0
        %1113 = vmatpush1.bf16.msra.mxu0 %v1110
        %1114 = vmatprep.subr.bf16.mxu0 0
        %1115 = vmatpush1.bf16.msra.mxu0 0
        %1116 = vmatprep.subr.bf16.mxu0 0
        %1117 = vmatpush1.bf16.msra.mxu0 0
        %1118 = vmatprep.subr.bf16.mxu0 0
        %1119 = vmatpush1.bf16.msra.mxu0 0
        %1120 = vmatprep.subr.bf16.mxu0 0
        %1121 = vmatpush1.bf16.msra.mxu0 0
        %1122 = vmatprep.subr.bf16.mxu0 0
        %1123 = vmatpush1.bf16.msra.mxu0 0
        %1124 = vmatprep.subr.bf16.mxu0 0
        %1125 = vmatpush1.bf16.msra.mxu0 0
        %1126 = vmatprep.subr.bf16.mxu0 0
        %1127 = vmatpush1.bf16.msra.mxu0 0
        %1128 = vmatprep.subr.bf16.mxu0 0
        %1129 = vmatpush1.bf16.msra.mxu0 0
        %1130 = vmatprep.subr.bf16.mxu0 0
        %1131 = vmatpush1.bf16.msra.mxu0 0
        %1132 = vmatprep.subr.bf16.mxu0 0
        %1133 = vmatpush1.bf16.msra.mxu0 0
        %1134 = vmatprep.subr.bf16.mxu0 0
        %1135 = vmatpush1.bf16.msra.mxu0 0
        %1136 = vmatprep.subr.bf16.mxu0 0
        %1137 = vmatpush1.bf16.msra.mxu0 0
        %1138 = vmatprep.subr.bf16.mxu0 0
        %1139 = vmatpush1.bf16.msra.mxu0 0
        %1140 = vmatprep.subr.bf16.mxu0 0
        %1141 = vmatpush1.bf16.msra.mxu0 0
        %1142 = vmatprep.subr.bf16.mxu0 0
        %1143 = vmatpush1.bf16.msra.mxu0 0
        %1144 = vmatprep.mubr.bf16.mxu0 0
        %1145 = vmatmul.mubr.bf16.gmra.mrb[0].mxu0 %v1107
        %v1146 = vpop.f32.mrb[0].mxu0
        %v1147 = vadd.f32 0.0, %v1146
        %v1148 = vpop.f32.mrb[0].mxu0
        %v1149 = vpop.f32.mrb[0].mxu0
        %v1150 = vpop.f32.mrb[0].mxu0
        %1151 = vdwg.mxu0
        %v1152 = vpack.c.bf16 %v1147, %v1147
        %v1154 = vsel %vm565, %v1152, 0
        %v1157 = vsel %vm627, %v562, 0
        %1159 = vmatprep.subr.bf16.mxu0 0
        %1160 = vmatpush1.bf16.msra.mxu0 %v1157
        %1161 = vmatprep.subr.bf16.mxu0 0
        %1162 = vmatpush1.bf16.msra.mxu0 0
        %1163 = vmatprep.subr.bf16.mxu0 0
        %1164 = vmatpush1.bf16.msra.mxu0 0
        %1165 = vmatprep.subr.bf16.mxu0 0
        %1166 = vmatpush1.bf16.msra.mxu0 0
        %1167 = vmatprep.subr.bf16.mxu0 0
        %1168 = vmatpush1.bf16.msra.mxu0 0
        %1169 = vmatprep.subr.bf16.mxu0 0
        %1170 = vmatpush1.bf16.msra.mxu0 0
        %1171 = vmatprep.subr.bf16.mxu0 0
        %1172 = vmatpush1.bf16.msra.mxu0 0
        %1173 = vmatprep.subr.bf16.mxu0 0
        %1174 = vmatpush1.bf16.msra.mxu0 0
        %1175 = vmatprep.subr.bf16.mxu0 0
        %1176 = vmatpush1.bf16.msra.mxu0 0
        %1177 = vmatprep.subr.bf16.mxu0 0
        %1178 = vmatpush1.bf16.msra.mxu0 0
        %1179 = vmatprep.subr.bf16.mxu0 0
        %1180 = vmatpush1.bf16.msra.mxu0 0
        %1181 = vmatprep.subr.bf16.mxu0 0
        %1182 = vmatpush1.bf16.msra.mxu0 0
        %1183 = vmatprep.subr.bf16.mxu0 0
        %1184 = vmatpush1.bf16.msra.mxu0 0
        %1185 = vmatprep.subr.bf16.mxu0 0
        %1186 = vmatpush1.bf16.msra.mxu0 0
        %1187 = vmatprep.subr.bf16.mxu0 0
        %1188 = vmatpush1.bf16.msra.mxu0 0
        %1189 = vmatprep.subr.bf16.mxu0 0
        %1190 = vmatpush1.bf16.msra.mxu0 0
        %1191 = vmatprep.mubr.bf16.mxu0 0
        %1192 = vmatmul.mubr.bf16.gmra.mrb[0].mxu0 %v1154
        %v1193 = vpop.f32.mrb[0].mxu0
        %v1194 = vadd.f32 0.0, %v1193
        %v1195 = vpop.f32.mrb[0].mxu0
        %v1196 = vpop.f32.mrb[0].mxu0
        %v1197 = vpop.f32.mrb[0].mxu0
        %1198 = vdwg.mxu0
        %v1199 = vadd.f32 %v1041, %v1194
        %v1200 = vld [vmem:[%s4] sm:$0x1]
        %v1202 = vlaneseq
        %v1203 = vshrl.u32 %v1202, 7
        %v1204 = vsub.s32 0, %v1203
        %v1205 = vrot.slane %v1200, %v1204
        %v1207 = vadd.f32 %v1199, %v1205
        %s1208 = scalar_lea.vmem %s464, %s553
        %v1209 = vld [vmem:[%s1208] sm:$0xff]
        %v1210 = vadd.f32 %v1209, %v1207
        %v1211 = vld [vmem:[%s5] sm:$0x1]
        %v1212 = vld [vmem:[%s6] sm:$0x1]
        %vm1213 = vcmask 261120
        %v1214 = vsel %vm1213, %v1210, 0.0
        %1215 = vadd.xlane.f32.xlu0 %v1214
        %v1216 = vpop.xlane.xlu0 %1215
        %v1217 = vrcp.pop 32.0
        %v1218 = vmul.f32 %v1216, %v1217
        %v1219 = vsub.f32 %v1210, %v1218
        %v1220 = vmul.f32 %v1219, %v1219
        %v1221 = vsel %vm1213, %v1220, 0.0
        %1222 = vadd.xlane.f32.xlu0 %v1221
        %v1223 = vpop.xlane.xlu0 %1222
        %v1224 = vmul.f32 %v1223, %v1217
        %v1225 = vadd.f32 %v1224, 1e-05
        %v1226 = vrsqrt.pop %v1225
        %v1227 = vmul.f32 %v1219, %v1226
        %v1229 = vlaneseq
        %v1230 = vshrl.u32 %v1229, 7
        %v1231 = vsub.s32 0, %v1230
        %v1232 = vrot.slane %v1211, %v1231
        %v1234 = vmul.f32 %v1227, %v1232
        %v1236 = vlaneseq
        %v1237 = vshrl.u32 %v1236, 7
        %v1238 = vsub.s32 0, %v1237
        %v1239 = vrot.slane %v1212, %v1238
        %v1241 = vadd.f32 %v1234, %v1239
        %v1242 = vpack.c.bf16 %v1241, %v1241
        %v1243 = vld [vmem:[#allocation5] sm:$0xf]
        %v1244 = vld [vmem:[#allocation5 + $0x4] sm:$0xf]
        %v1245 = vld [vmem:[#allocation5 + $0x8] sm:$0xf]
        %v1246 = vld [vmem:[#allocation5 + $0xc] sm:$0xf]
        %v1247 = vld [vmem:[%s8] sm:$0x1]
        %v1249 = vlaneseq
        %v1250 = vshrl.u32 %v1249, 7
        %v1251 = vsub.s32 0, %v1250
        %v1252 = vrot.slane %v1247, %v1251
        %v1258 = vunpack.c.l.b16 %v1243
        %v1259 = vunpack.c.l.b16 %v1244
        %v1260 = vunpack.c.l.b16 %v1245
        %v1261 = vunpack.c.l.b16 %v1246
        %v1262 = vpack.c.b16 %v1259, %v1258
        %v1263 = vpack.c.b16 %v1261, %v1260
        %v1267 = vsel %vm1213, %v1242, 0
        %1269 = vmatprep.subr.bf16.mxu0 0
        %1270 = vmatpush1.bf16.msra.mxu0 %v1262
        %1271 = vmatprep.subr.bf16.mxu0 0
        %1272 = vmatpush1.bf16.msra.mxu0 %v1263
        %1273 = vmatprep.subr.bf16.mxu0 0
        %1274 = vmatpush1.bf16.msra.mxu0 0
        %1275 = vmatprep.subr.bf16.mxu0 0
        %1276 = vmatpush1.bf16.msra.mxu0 0
        %1277 = vmatprep.subr.bf16.mxu0 0
        %1278 = vmatpush1.bf16.msra.mxu0 0
        %1279 = vmatprep.subr.bf16.mxu0 0
        %1280 = vmatpush1.bf16.msra.mxu0 0
        %1281 = vmatprep.subr.bf16.mxu0 0
        %1282 = vmatpush1.bf16.msra.mxu0 0
        %1283 = vmatprep.subr.bf16.mxu0 0
        %1284 = vmatpush1.bf16.msra.mxu0 0
        %1285 = vmatprep.subr.bf16.mxu0 0
        %1286 = vmatpush1.bf16.msra.mxu0 0
        %1287 = vmatprep.subr.bf16.mxu0 0
        %1288 = vmatpush1.bf16.msra.mxu0 0
        %1289 = vmatprep.subr.bf16.mxu0 0
        %1290 = vmatpush1.bf16.msra.mxu0 0
        %1291 = vmatprep.subr.bf16.mxu0 0
        %1292 = vmatpush1.bf16.msra.mxu0 0
        %1293 = vmatprep.subr.bf16.mxu0 0
        %1294 = vmatpush1.bf16.msra.mxu0 0
        %1295 = vmatprep.subr.bf16.mxu0 0
        %1296 = vmatpush1.bf16.msra.mxu0 0
        %1297 = vmatprep.subr.bf16.mxu0 0
        %1298 = vmatpush1.bf16.msra.mxu0 0
        %1299 = vmatprep.subr.bf16.mxu0 0
        %1300 = vmatpush1.bf16.msra.mxu0 0
        %1301 = vmatprep.mubr.bf16.mxu0 0
        %1302 = vmatmul.mubr.bf16.gmra.mrb[0].mxu0 %v1267
        %v1303 = vpop.f32.mrb[0].mxu0
        %v1304 = vadd.f32 %v1252, %v1303
        %v1305 = vpop.f32.mrb[0].mxu0
        %v1306 = vpop.f32.mrb[0].mxu0
        %v1307 = vpop.f32.mrb[0].mxu0
        %1308 = vdwg.mxu0
        %v1309 = vmul.f32 %v1304, 0.5
        %v1310 = vmul.f32 %v1304, 0.70710677
        %v1311 = verf.f32.pop %v1310
        %v1312 = vadd.f32 %v1311, 1.0
        %v1313 = vmul.f32 %v1309, %v1312
        %v1314 = vpack.c.bf16 %v1313, %v1313
        %v1315 = vld [vmem:[%s9] sm:$0xf]
        %v1316 = vld [vmem:[%s9 + $0x4] sm:$0xf]
        %v1317 = vld [vmem:[%s9 + $0x8] sm:$0xf]
        %v1318 = vld [vmem:[%s9 + $0xc] sm:$0xf]
        %v1319 = vld [vmem:[%s9 + $0x10] sm:$0xf]
        %v1320 = vld [vmem:[%s9 + $0x14] sm:$0xf]
        %v1321 = vld [vmem:[%s9 + $0x18] sm:$0xf]
        %v1322 = vld [vmem:[%s9 + $0x1c] sm:$0xf]
        %v1323 = vld [vmem:[%s10] sm:$0x1]
        %v1325 = vlaneseq
        %v1326 = vshrl.u32 %v1325, 7
        %v1327 = vsub.s32 0, %v1326
        %v1328 = vrot.slane %v1323, %v1327
        %v1338 = vunpack.c.l.b16 %v1315
        %v1339 = vunpack.c.l.b16 %v1316
        %v1340 = vunpack.c.l.b16 %v1317
        %v1341 = vunpack.c.l.b16 %v1318
        %v1342 = vunpack.c.l.b16 %v1319
        %v1343 = vunpack.c.l.b16 %v1320
        %v1344 = vunpack.c.l.b16 %v1321
        %v1345 = vunpack.c.l.b16 %v1322
        %v1346 = vpack.c.b16 %v1339, %v1338
        %v1347 = vpack.c.b16 %v1341, %v1340
        %v1348 = vpack.c.b16 %v1343, %v1342
        %v1349 = vpack.c.b16 %v1345, %v1344
        %vm1354 = vcmask 523264
        %v1356 = vsel %vm1354, %v1314, 0
        %1358 = vmatprep.subr.bf16.mxu0 0
        %1359 = vmatpush1.bf16.msra.mxu0 %v1346
        %1360 = vmatprep.subr.bf16.mxu0 0
        %1361 = vmatpush1.bf16.msra.mxu0 %v1347
        %1362 = vmatprep.subr.bf16.mxu0 0
        %1363 = vmatpush1.bf16.msra.mxu0 %v1348
        %1364 = vmatprep.subr.bf16.mxu0 0
        %1365 = vmatpush1.bf16.msra.mxu0 %v1349
        %1366 = vmatprep.subr.bf16.mxu0 0
        %1367 = vmatpush1.bf16.msra.mxu0 0
        %1368 = vmatprep.subr.bf16.mxu0 0
        %1369 = vmatpush1.bf16.msra.mxu0 0
        %1370 = vmatprep.subr.bf16.mxu0 0
        %1371 = vmatpush1.bf16.msra.mxu0 0
        %1372 = vmatprep.subr.bf16.mxu0 0
        %1373 = vmatpush1.bf16.msra.mxu0 0
        %1374 = vmatprep.subr.bf16.mxu0 0
        %1375 = vmatpush1.bf16.msra.mxu0 0
        %1376 = vmatprep.subr.bf16.mxu0 0
        %1377 = vmatpush1.bf16.msra.mxu0 0
        %1378 = vmatprep.subr.bf16.mxu0 0
        %1379 = vmatpush1.bf16.msra.mxu0 0
        %1380 = vmatprep.subr.bf16.mxu0 0
        %1381 = vmatpush1.bf16.msra.mxu0 0
        %1382 = vmatprep.subr.bf16.mxu0 0
        %1383 = vmatpush1.bf16.msra.mxu0 0
        %1384 = vmatprep.subr.bf16.mxu0 0
        %1385 = vmatpush1.bf16.msra.mxu0 0
        %1386 = vmatprep.subr.bf16.mxu0 0
        %1387 = vmatpush1.bf16.msra.mxu0 0
        %1388 = vmatprep.subr.bf16.mxu0 0
        %1389 = vmatpush1.bf16.msra.mxu0 0
        %1390 = vmatprep.mubr.bf16.mxu0 0
        %1391 = vmatmul.mubr.bf16.gmra.mrb[0].mxu0 %v1356
        %v1392 = vpop.f32.mrb[0].mxu0
        %v1393 = vadd.f32 %v1328, %v1392
        %v1394 = vpop.f32.mrb[0].mxu0
        %v1395 = vpop.f32.mrb[0].mxu0
        %v1396 = vpop.f32.mrb[0].mxu0
        %1397 = vdwg.mxu0
        %v1398 = vadd.f32 %v1241, %v1393
        %v1399 = vld [vmem:[%s11] sm:$0x1]
        %v1400 = vld [vmem:[%s12] sm:$0x1]
        %v1401 = vsel %vm1213, %v1398, 0.0
        %1402 = vadd.xlane.f32.xlu0 %v1401
        %v1403 = vpop.xlane.xlu0 %1402
        %v1404 = vmul.f32 %v1403, %v1217
        %v1405 = vsub.f32 %v1398, %v1404
        %v1406 = vmul.f32 %v1405, %v1405
        %v1407 = vsel %vm1213, %v1406, 0.0
        %1408 = vadd.xlane.f32.xlu0 %v1407
        %v1409 = vpop.xlane.xlu0 %1408
        %v1410 = vmul.f32 %v1409, %v1217
        %v1411 = vadd.f32 %v1410, 1e-05
        %v1412 = vrsqrt.pop %v1411
        %v1413 = vmul.f32 %v1405, %v1412
        %v1415 = vlaneseq
        %v1416 = vshrl.u32 %v1415, 7
        %v1417 = vsub.s32 0, %v1416
        %v1418 = vrot.slane %v1399, %v1417
        %v1420 = vmul.f32 %v1413, %v1418
        %v1422 = vlaneseq
        %v1423 = vshrl.u32 %v1422, 7
        %v1424 = vsub.s32 0, %v1423
        %v1425 = vrot.slane %v1400, %v1424
        %v1427 = vadd.f32 %v1420, %v1425
        %1428 = vst.msk [vmem:[%s460] sm:$0xff] %vm1213, %v1427
        %s1429 = sand.u32 %s328, 1
        %s1430 = scalar_lea.sflag [#allocation7], %s1429
        %s1431 = sand.u32 %s328, 1
        %s1432 = smul.addr %s1431, 8
        %s1433 = scalar_lea.vmem [#allocation8], %s1432
        // Predicated region
        $region81: #{tpu_custom_call.1} parent=71 // pred_check
          %p1434 = pneg %p338
        $region82: #{tpu_custom_call.1} parent=71 // pred_check_branch
          %1436 = sbr.rel (%p1434) target = $region84
        $region83: #{tpu_custom_call.1} parent=71 // pred_region
          %s1438 = ssub.s32 128, 128
          %1439 = vsyncadd %s1430, %s1438
          %s1440 = sadd.s32 %s33, %s32
          %s1441 = smul.addr %s1440, 128
          %s1442 = scalar_lea.hbm %s13, %s1441
          %s1444 = sshll.u32 %s1433, 4
          %s1445 = int_to_ptr.vmem [resolvable:$true] %s1444
          %1447 = dma.vmem_to_hbm [thread:$0]  %s1445, 128, %s1442, %s1430
        $region84: #{tpu_custom_call.1} parent=71 // pred_fallthru
          _
      $region72: #{tpu_custom_call.1} parent=5 // pred_fallthru
        _
      %p1448 = scmp.le.s32.totalorder 2, %s23
      // Predicated region
      $region85: #{tpu_custom_call.1} parent=5 // pred_check
        %p1449 = pneg %p1448
      $region86: #{tpu_custom_call.1} parent=5 // pred_check_branch
        %1451 = sbr.rel (%p1449) target = $region88
      $region87: #{tpu_custom_call.1} parent=5 // pred_region
        %s1452 = ssub.s32 %s23, 2
        // Predicated region
        $region89: #{tpu_custom_call.1} parent=87 // pred_check
          %p1453 = pneg %p344
        $region90: #{tpu_custom_call.1} parent=87 // pred_check_branch
          %1455 = sbr.rel (%p1453) target = $region92
        $region91: #{tpu_custom_call.1} parent=87 // pred_region
          %s1456 = sand.u32 %s329, 1
          %s1457 = scalar_lea.sflag [#allocation7], %s1456
          %s1458 = sand.u32 %s329, 1
          %s1459 = smul.addr %s1458, 8
          %s1460 = scalar_lea.vmem [#allocation8], %s1459
          %1461 = dma.done %s1457, 128
        $region92: #{tpu_custom_call.1} parent=87 // pred_fallthru
          _
      $region88: #{tpu_custom_call.1} parent=5 // pred_fallthru
        _
    $region6: #{tpu_custom_call.1} parent=1 // loop_footer
      %s27 = sadd.s32 1, %s23
    $region7: #{tpu_custom_call.1} parent=1 // loop_footer_branch
      %22 = sbr.rel target = $region3
    $region8: #{tpu_custom_call.1} parent=1 // loop_exit
      _
    %1462 = vsyncpa [#allocation6], 1
    %s1463 = scalar_lea.sflag [#allocation6], 1
    %1464 = vsyncpa %s1463, 1
    %1465 = vsyncpa [#allocation7], 1
    %s1466 = scalar_lea.sflag [#allocation7], 1
    %1467 = vsyncpa %s1466, 1

</llo_original>
